<compile_context>
chip_gen: v7x
topology: tpu7x:2x2x1
jax: 0.10.0
libtpu: 0.0.40
codegen_flags: <defaults>
</compile_context>

<pallas_src>
import functools
import math

import jax
import jax.numpy as jnp
import numpy as np
from jax import lax
from jax.experimental import pallas as pl
from jax.experimental.pallas import tpu as pltpu

EMBED_DIM = 768   # module hardcodes fc1 = nn.Linear(768, 512)
HIDDEN = 512      # module hardcodes fc2 = nn.Linear(512, 1)


def _attn_kernel(inv_sqrt_s, inv_scale_e, inv_s,
                 q_ref, k_ref, v_ref, w1_ref, b1_ref, w2_ref, b2_ref,
                 out_ref, wts_ref):
    BB, S, E = q_ref.shape

    q = q_ref[...]          # (BB, S, E) f32
    k = k_ref[...]
    v = v_ref[...]

    # ---- gate MLP fc1, folded over all BB*S tokens of the block ------------
    # (BB*S, 768) @ (768, 512): bf16 operands on the MXU, f32 accumulation.
    v_tok = v.reshape(BB * S, E).astype(jnp.bfloat16)
    h_all = jnp.tanh(
        jnp.dot(v_tok, w1_ref[...], preferred_element_type=jnp.float32)
        + b1_ref[...])                                           # (BB*S, H) f32

    # ---- fc2 hoisted: one (1,H) x (BB*S,H)^T contraction for every token ----
    # Tokens land on the lane axis, so the reshape below only splits the lane
    # dim into (batch, key) and is a pure expand_dims at BB == 1 (the
    # megacore-friendly block size picked at small B).
    g_all = lax.dot_general(
        w2_ref[...], h_all, dimension_numbers=(((1,), (1,)), ((), ())),
        preferred_element_type=jnp.float32) + b2_ref[...]        # (1, BB*S)
    g = g_all.reshape(BB, 1, S)      # gate per key token, broadcast over queries

    # ---- scores: one batched q @ k^T over the whole block -------------------
    # torch divides by sqrt(q.shape[1]) == sqrt(S) for 3-D inputs.
    scores = jnp.einsum('bqe,bke->bqk', q, k,
                        preferred_element_type=jnp.float32) * inv_sqrt_s

    # ---- softmax over the QUERY axis (torch dim=1) ---------------------------
    # EUP approximate reciprocal: its error is damped far below 1e-4 by the
    # 1/sqrt(768) rescale and the exact key-axis softmax that follow.
    m0 = jnp.max(scores, axis=1, keepdims=True)
    e0 = jnp.exp(scores - m0)
    s = e0 * pl.reciprocal(jnp.sum(e0, axis=1, keepdims=True), approx=True)

    # mean over queries of a query-axis softmax is exactly 1/S: use the
    # compile-time constant instead of re-reducing s (cheaper and exact).
    attn_scores = (s * (1.0 - g) + inv_s * g) * inv_scale_e      # (BB, S, S)

    # ---- softmax over the KEY axis — this IS the returned attn_weights ------
    # Exact reciprocal here to keep the 1e-4 reference check tight.
    m1 = jnp.max(attn_scores, axis=-1, keepdims=True)
    e1 = jnp.exp(attn_scores - m1)
    w = e1 * pl.reciprocal(jnp.sum(e1, axis=-1, keepdims=True), approx=False)
    # nn.Dropout(p=0) is the identity -> omitted.

    # ---- attn_output = attn_weights @ v + q ----------------------------------
    out = jnp.einsum('bqk,bke->bqe', w, v,
                     preferred_element_type=jnp.float32) + q

    out_ref[...] = out.astype(out_ref.dtype)
    wts_ref[...] = w.astype(wts_ref.dtype)


def _pick_block_b(B, S, target_rows=512):
    """Pick the per-grid-step batch block BB (B % BB == 0).

    Preferences, in order:
      * keep >= 2 grid steps whenever B >= 2 so both v7x TensorCores get work
        (small problems are overhead/latency bound, not MXU-row bound);
      * keep the folded fc1 M (= BB*S) at or below ~target_rows;
      * among those, prefer BB*S a multiple of 256 (v6e/v7x MXU), then 128 (v5e).
    """
    divisors = [d for d in range(1, B + 1) if B % d == 0]
    cands = [d for d in divisors if (B // d) >= 2] or divisors
    fit = [d for d in cands if d * S <= target_rows] or [min(cands)]
    for align in (256, 128):
        aligned = [d for d in fit if (d * S) % align == 0]
        if aligned:
            return max(aligned)
    return max(fit)


def _vmem_cap_bytes(default=64 * 1024 * 1024):
    # v5e/v6e: 128 MiB per core; v7x: 64 MiB per TensorCore.
    try:
        return int(pltpu.get_tpu_info().vmem_capacity_bytes)
    except Exception:
        return default


def scaled_dot_product_attention(q, k, v, w1t, b1, w2, b2,
                                 embed_dim=EMBED_DIM, block_b=None):
    B, S, E = q.shape
    assert E == EMBED_DIM and w1t.shape == (EMBED_DIM, HIDDEN)
    BB = _pick_block_b(B, S) if block_b is None else block_b
    assert B % BB == 0
    grid = (B // BB,)

    # bf16 fc1 weight: half the DMA/VMEM footprint, full-rate bf16 MXU path
    # (f32 accumulation inside the kernel).
    w1t_bf = w1t.astype(jnp.bfloat16)

    kernel = functools.partial(
        _attn_kernel,
        float(1.0 / math.sqrt(S)),          # torch divides by sqrt(q.shape[1])
        float(1.0 / math.sqrt(embed_dim)),  # self.scale = sqrt(embed_dim)
        float(1.0 / S))                     # exact mean of a query-axis softmax

    tok = lambda i: (i, 0, 0)
    full = lambda i: (0, 0)

    # Scoped-VMEM limit derived from the device's actual capacity (v7x has only
    # 64 MiB/TC); a no-op at the test size, a guard if S / BB are scaled up.
    est_bytes = 2 * 4 * (4 * BB * S * E + BB * S * S)            # dbl-buffered f32 I/O
    est_bytes += 2 * (2 * E * HIDDEN + 4 * (2 * HIDDEN + 1))     # bf16 fc1 + small f32
    vmem_cap = _vmem_cap_bytes()
    vmem_limit = int(min(vmem_cap - 8 * 1024 * 1024,
                         max(32 * 1024 * 1024, 2 * est_bytes)))

    # TODO(synk): if S is scaled toward >=1024, add a flash-style inner key
    # tile so the O(S^2) attn_weights slab stays under v7x's 64 MiB VMEM.
    # TODO(synk): weight/bias inputs could use pipeline_mode=pl.Buffered(1) to
    # drop their second VMEM buffer on v7x; left at the default for portability.
    return pl.pallas_call(
        kernel,
        out_shape=(jax.ShapeDtypeStruct((B, S, E), jnp.float32),
                   jax.ShapeDtypeStruct((B, S, S), jnp.float32)),
        grid=grid,
        in_specs=[
            pl.BlockSpec((BB, S, E), tok),        # q
            pl.BlockSpec((BB, S, E), tok),        # k
            pl.BlockSpec((BB, S, E), tok),        # v
            pl.BlockSpec((E, HIDDEN), full),      # fc1 weight (transposed, bf16)
            pl.BlockSpec((1, HIDDEN), full),      # fc1 bias
            pl.BlockSpec((1, HIDDEN), full),      # fc2 weight (torch layout 1 x H)
            pl.BlockSpec((1, 1), full),           # fc2 bias
        ],
        out_specs=(pl.BlockSpec((BB, S, E), tok),
                   pl.BlockSpec((BB, S, S), tok)),
        compiler_params=pltpu.CompilerParams(
            dimension_semantics=("parallel",),
            vmem_limit_bytes=vmem_limit),
    )(q, k, v, w1t_bf, b1, w2, b2)


def _reference(q, k, v, w1t, b1, w2, b2, embed_dim=EMBED_DIM):
    h = jnp.tanh(jnp.einsum('bse,eh->bsh', v, w1t) + b1.reshape(1, 1, -1))
    g = jnp.einsum('bsh,oh->bso', h, w2) + b2.reshape(1, 1, 1)    # (B,S,1)
    g = g[..., 0]                                                 # squeeze -> (B,S)
    scores = jnp.einsum('bqe,bke->bqk', q, k) / jnp.sqrt(jnp.float32(q.shape[1]))
    s = jax.nn.softmax(scores, axis=1)
    c = jnp.mean(s, axis=1, keepdims=True)
    gr = g[:, None, :]
    attn_scores = (s * (1.0 - gr) + c * gr) / jnp.sqrt(jnp.float32(embed_dim))
    w = jax.nn.softmax(attn_scores, axis=-1)
    out = jnp.einsum('bqk,bke->bqe', w, v) + q
    return out, w


if __name__ == "__main__":
    B, S, E = 2, 8, EMBED_DIM
    key = jax.random.PRNGKey(0)
    kq, kk, kv, kw1, kb1, kw2, kb2 = jax.random.split(key, 7)

    q = jax.random.normal(kq, (B, S, E), jnp.float32) * 0.5
    k = jax.random.normal(kk, (B, S, E), jnp.float32) * 0.5
    v = jax.random.normal(kv, (B, S, E), jnp.float32) * 0.5

    # Deterministic Linear params (PyTorch-style uniform(-1/sqrt(fan_in), ...)).
    lim1 = 1.0 / np.sqrt(EMBED_DIM)
    lim2 = 1.0 / np.sqrt(HIDDEN)
    w1t = jax.random.uniform(kw1, (EMBED_DIM, HIDDEN), jnp.float32, -lim1, lim1)
    b1 = jax.random.uniform(kb1, (1, HIDDEN), jnp.float32, -lim1, lim1)
    w2 = jax.random.uniform(kw2, (1, HIDDEN), jnp.float32, -lim2, lim2)
    b2 = jax.random.uniform(kb2, (1, 1), jnp.float32, -lim2, lim2)
    # TODO(synk): fc3 = nn.Linear(61, 80) is defined but never used in forward; skipped.

    out, wts = scaled_dot_product_attention(q, k, v, w1t, b1, w2, b2)
    jax.block_until_ready((out, wts))

    ref_out, ref_wts = _reference(q, k, v, w1t, b1, w2, b2)
    np.testing.assert_allclose(np.asarray(out), np.asarray(ref_out), rtol=1e-4, atol=1e-4)
    np.testing.assert_allclose(np.asarray(wts), np.asarray(ref_wts), rtol=1e-4, atol=1e-4)

    print("KERNEL_OK")
</pallas_src>

<mosaic_0001>
module attributes {stable_mosaic.version = 11 : i64} {
  func.func @_attn_kernel(%arg0: i32, %arg1: memref<1x8x768xf32, #tpu.memory_space<vmem>>, %arg2: memref<1x8x768xf32, #tpu.memory_space<vmem>>, %arg3: memref<1x8x768xf32, #tpu.memory_space<vmem>>, %arg4: memref<768x512xbf16, #tpu.memory_space<vmem>>, %arg5: memref<1x512xf32, #tpu.memory_space<vmem>>, %arg6: memref<1x512xf32, #tpu.memory_space<vmem>>, %arg7: memref<1x1xf32, #tpu.memory_space<vmem>>, %arg8: memref<1x8x768xf32, #tpu.memory_space<vmem>>, %arg9: memref<1x8x8xf32, #tpu.memory_space<vmem>>) attributes {dimension_semantics = [#tpu.dimension_semantics<parallel>], iteration_bounds = array<i64: 2>, scalar_prefetch = 0 : i64, scratch_operands = 0 : i64, tpu.core_type = #tpu.core_type<tc>, window_params = [{transform_indices = @transform_0, window_bounds = array<i64: 1, 8, 768>}, {transform_indices = @transform_1, window_bounds = array<i64: 1, 8, 768>}, {transform_indices = @transform_2, window_bounds = array<i64: 1, 8, 768>}, {pipeline_mode = #tpu.pipeline_mode<synchronous>, transform_indices = @transform_3, window_bounds = array<i64: 768, 512>}, {pipeline_mode = #tpu.pipeline_mode<synchronous>, transform_indices = @transform_4, window_bounds = array<i64: 1, 512>}, {pipeline_mode = #tpu.pipeline_mode<synchronous>, transform_indices = @transform_5, window_bounds = array<i64: 1, 512>}, {pipeline_mode = #tpu.pipeline_mode<synchronous>, transform_indices = @transform_6, window_bounds = array<i64: 1, 1>}, {transform_indices = @transform_7, window_bounds = array<i64: 1, 8, 768>}, {transform_indices = @transform_8, window_bounds = array<i64: 1, 8, 8>}]} {
    %c0 = arith.constant 0 : index
    %c0_0 = arith.constant 0 : index
    %c0_1 = arith.constant 0 : index
    %0 = vector.load %arg1[%c0, %c0_0, %c0_1] : memref<1x8x768xf32, #tpu.memory_space<vmem>>, vector<1x8x768xf32>
    %c0_2 = arith.constant 0 : index
    %c0_3 = arith.constant 0 : index
    %c0_4 = arith.constant 0 : index
    %1 = vector.load %arg2[%c0_2, %c0_3, %c0_4] : memref<1x8x768xf32, #tpu.memory_space<vmem>>, vector<1x8x768xf32>
    %c0_5 = arith.constant 0 : index
    %c0_6 = arith.constant 0 : index
    %c0_7 = arith.constant 0 : index
    %2 = vector.load %arg3[%c0_5, %c0_6, %c0_7] : memref<1x8x768xf32, #tpu.memory_space<vmem>>, vector<1x8x768xf32>
    %3 = vector.shape_cast %2 : vector<1x8x768xf32> to vector<8x768xf32>
    %4 = arith.truncf %3 : vector<8x768xf32> to vector<8x768xbf16>
    %c0_8 = arith.constant 0 : index
    %c0_9 = arith.constant 0 : index
    %5 = vector.load %arg4[%c0_8, %c0_9] : memref<768x512xbf16, #tpu.memory_space<vmem>>, vector<768x512xbf16>
    %cst = arith.constant dense<0.000000e+00> : vector<8x512xf32>
    %6 = tpu.matmul %4, %5, %cst {dimension_numbers = #tpu.dot_dimension_numbers<[1], [0], [0], [1], [0, 0, 1, 1], [], []>} : vector<8x768xbf16>, vector<768x512xbf16>, vector<8x512xf32> -> vector<8x512xf32>
    %c0_10 = arith.constant 0 : index
    %c0_11 = arith.constant 0 : index
    %7 = vector.load %arg5[%c0_10, %c0_11] : memref<1x512xf32, #tpu.memory_space<vmem>>, vector<1x512xf32>
    %8 = vector.broadcast %7 : vector<1x512xf32> to vector<8x512xf32>
    %9 = arith.addf %6, %8 : vector<8x512xf32>
    %10 = math.tanh %9 : vector<8x512xf32>
    %c0_12 = arith.constant 0 : index
    %c0_13 = arith.constant 0 : index
    %11 = vector.load %arg6[%c0_12, %c0_13] : memref<1x512xf32, #tpu.memory_space<vmem>>, vector<1x512xf32>
    %cst_14 = arith.constant dense<0.000000e+00> : vector<1x8xf32>
    %12 = tpu.matmul %11, %10, %cst_14 {dimension_numbers = #tpu.dot_dimension_numbers<[1], [1], [0], [0], [0, 0, 1, 0], [], []>} : vector<1x512xf32>, vector<8x512xf32>, vector<1x8xf32> -> vector<1x8xf32>
    %c0_15 = arith.constant 0 : index
    %c0_16 = arith.constant 0 : index
    %13 = vector.load %arg7[%c0_15, %c0_16] : memref<1x1xf32, #tpu.memory_space<vmem>>, vector<1x1xf32>
    %14 = vector.broadcast %13 : vector<1x1xf32> to vector<1x8xf32>
    %15 = arith.addf %12, %14 : vector<1x8xf32>
    %16 = vector.shape_cast %15 : vector<1x8xf32> to vector<1x1x8xf32>
    "tpu.trace_start"() <{level = 10 : i32, message = "bqe,bke->bqk"}> : () -> ()
    %cst_17 = arith.constant dense<0.000000e+00> : vector<1x8x8xf32>
    %17 = tpu.matmul %0, %1, %cst_17 {dimension_numbers = #tpu.dot_dimension_numbers<[2], [2], [1], [1], [0, 0, 0, 1, 1, 1], [0], [0]>} : vector<1x8x768xf32>, vector<1x8x768xf32>, vector<1x8x8xf32> -> vector<1x8x8xf32>
    "tpu.trace_stop"() : () -> ()
    %cst_18 = arith.constant 0.353553385 : f32
    %18 = vector.broadcast %cst_18 : f32 to vector<1x8x8xf32>
    %19 = arith.mulf %17, %18 : vector<1x8x8xf32>
    %cst_19 = arith.constant dense<0xFF800000> : vector<1x8xf32>
    %20 = vector.multi_reduction <maximumf>, %19, %cst_19 [1] : vector<1x8x8xf32> to vector<1x8xf32>
    %21 = vector.shape_cast %20 : vector<1x8xf32> to vector<1x1x8xf32>
    %22 = vector.broadcast %21 : vector<1x1x8xf32> to vector<1x8x8xf32>
    %23 = arith.subf %19, %22 : vector<1x8x8xf32>
    %24 = math.exp %23 : vector<1x8x8xf32>
    %cst_20 = arith.constant dense<0.000000e+00> : vector<1x8xf32>
    %25 = vector.multi_reduction <add>, %24, %cst_20 [1] : vector<1x8x8xf32> to vector<1x8xf32>
    %26 = vector.shape_cast %25 : vector<1x8xf32> to vector<1x1x8xf32>
    %27 = tpu.reciprocal %26 {approx = true} : vector<1x1x8xf32> -> vector<1x1x8xf32>
    %28 = vector.broadcast %27 : vector<1x1x8xf32> to vector<1x8x8xf32>
    %29 = arith.mulf %24, %28 : vector<1x8x8xf32>
    %cst_21 = arith.constant 1.000000e+00 : f32
    %30 = vector.broadcast %cst_21 : f32 to vector<1x1x8xf32>
    %31 = arith.subf %30, %16 : vector<1x1x8xf32>
    %32 = vector.broadcast %31 : vector<1x1x8xf32> to vector<1x8x8xf32>
    %33 = arith.mulf %29, %32 : vector<1x8x8xf32>
    %cst_22 = arith.constant 1.250000e-01 : f32
    %34 = vector.broadcast %cst_22 : f32 to vector<1x1x8xf32>
    %35 = arith.mulf %34, %16 : vector<1x1x8xf32>
    %36 = vector.broadcast %35 : vector<1x1x8xf32> to vector<1x8x8xf32>
    %37 = arith.addf %33, %36 : vector<1x8x8xf32>
    %cst_23 = arith.constant 0.0360843912 : f32
    %38 = vector.broadcast %cst_23 : f32 to vector<1x8x8xf32>
    %39 = arith.mulf %37, %38 : vector<1x8x8xf32>
    %cst_24 = arith.constant dense<0xFF800000> : vector<1x8xf32>
    %40 = vector.multi_reduction <maximumf>, %39, %cst_24 [2] : vector<1x8x8xf32> to vector<1x8xf32>
    %41 = vector.shape_cast %40 : vector<1x8xf32> to vector<1x8x1xf32>
    %42 = vector.broadcast %41 : vector<1x8x1xf32> to vector<1x8x8xf32>
    %43 = arith.subf %39, %42 : vector<1x8x8xf32>
    %44 = math.exp %43 : vector<1x8x8xf32>
    %cst_25 = arith.constant dense<0.000000e+00> : vector<1x8xf32>
    %45 = vector.multi_reduction <add>, %44, %cst_25 [2] : vector<1x8x8xf32> to vector<1x8xf32>
    %46 = vector.shape_cast %45 : vector<1x8xf32> to vector<1x8x1xf32>
    %47 = tpu.reciprocal %46 : vector<1x8x1xf32> -> vector<1x8x1xf32>
    %48 = vector.broadcast %47 : vector<1x8x1xf32> to vector<1x8x8xf32>
    %49 = arith.mulf %44, %48 : vector<1x8x8xf32>
    "tpu.trace_start"() <{level = 10 : i32, message = "bqk,bke->bqe"}> : () -> ()
    %cst_26 = arith.constant dense<0.000000e+00> : vector<1x8x768xf32>
    %50 = tpu.matmul %49, %2, %cst_26 {dimension_numbers = #tpu.dot_dimension_numbers<[2], [1], [1], [2], [0, 0, 0, 1, 1, 2], [0], [0]>} : vector<1x8x8xf32>, vector<1x8x768xf32>, vector<1x8x768xf32> -> vector<1x8x768xf32>
    "tpu.trace_stop"() : () -> ()
    %51 = arith.addf %50, %0 : vector<1x8x768xf32>
    %c0_27 = arith.constant 0 : index
    %c0_28 = arith.constant 0 : index
    %c0_29 = arith.constant 0 : index
    %52 = vector.load %arg8[%c0_27, %c0_28, %c0_29] : memref<1x8x768xf32, #tpu.memory_space<vmem>>, vector<1x8x768xf32>
    tpu.vector_store %arg8[%c0_27, %c0_28, %c0_29], %51 {strides = array<i32>} : memref<1x8x768xf32, #tpu.memory_space<vmem>>, vector<1x8x768xf32>,
    %c0_30 = arith.constant 0 : index
    %c0_31 = arith.constant 0 : index
    %c0_32 = arith.constant 0 : index
    %53 = vector.load %arg9[%c0_30, %c0_31, %c0_32] : memref<1x8x8xf32, #tpu.memory_space<vmem>>, vector<1x8x8xf32>
    tpu.vector_store %arg9[%c0_30, %c0_31, %c0_32], %49 {strides = array<i32>} : memref<1x8x8xf32, #tpu.memory_space<vmem>>, vector<1x8x8xf32>,
    return
  }
  func.func @transform_0(%arg0: i32) -> (i32, i32, i32) {
    %c0_i32 = arith.constant 0 : i32
    %c0_i32_0 = arith.constant 0 : i32
    %c0_i32_1 = arith.constant 0 : i32
    return %arg0, %c0_i32, %c0_i32_0 : i32, i32, i32
  }
  func.func @transform_1(%arg0: i32) -> (i32, i32, i32) {
    %c0_i32 = arith.constant 0 : i32
    %c0_i32_0 = arith.constant 0 : i32
    %c0_i32_1 = arith.constant 0 : i32
    return %arg0, %c0_i32, %c0_i32_0 : i32, i32, i32
  }
  func.func @transform_2(%arg0: i32) -> (i32, i32, i32) {
    %c0_i32 = arith.constant 0 : i32
    %c0_i32_0 = arith.constant 0 : i32
    %c0_i32_1 = arith.constant 0 : i32
    return %arg0, %c0_i32, %c0_i32_0 : i32, i32, i32
  }
  func.func @transform_3(%arg0: i32) -> (i32, i32) {
    %c0_i32 = arith.constant 0 : i32
    %c0_i32_0 = arith.constant 0 : i32
    %c0_i32_1 = arith.constant 0 : i32
    return %c0_i32, %c0_i32_0 : i32, i32
  }
  func.func @transform_4(%arg0: i32) -> (i32, i32) {
    %c0_i32 = arith.constant 0 : i32
    %c0_i32_0 = arith.constant 0 : i32
    %c0_i32_1 = arith.constant 0 : i32
    return %c0_i32, %c0_i32_0 : i32, i32
  }
  func.func @transform_5(%arg0: i32) -> (i32, i32) {
    %c0_i32 = arith.constant 0 : i32
    %c0_i32_0 = arith.constant 0 : i32
    %c0_i32_1 = arith.constant 0 : i32
    return %c0_i32, %c0_i32_0 : i32, i32
  }
  func.func @transform_6(%arg0: i32) -> (i32, i32) {
    %c0_i32 = arith.constant 0 : i32
    %c0_i32_0 = arith.constant 0 : i32
    %c0_i32_1 = arith.constant 0 : i32
    return %c0_i32, %c0_i32_0 : i32, i32
  }
  func.func @transform_7(%arg0: i32) -> (i32, i32, i32) {
    %c0_i32 = arith.constant 0 : i32
    %c0_i32_0 = arith.constant 0 : i32
    %c0_i32_1 = arith.constant 0 : i32
    return %arg0, %c0_i32, %c0_i32_0 : i32, i32, i32
  }
  func.func @transform_8(%arg0: i32) -> (i32, i32, i32) {
    %c0_i32 = arith.constant 0 : i32
    %c0_i32_0 = arith.constant 0 : i32
    %c0_i32_1 = arith.constant 0 : i32
    return %arg0, %c0_i32, %c0_i32_0 : i32, i32, i32
  }
}

</mosaic_0001>

<llo_original>
// kernel: tpu_custom_call.1
$region0: #{tpu_custom_call.1}
  #allocation0 [shape = 'u32[]', space=smem, size = 0x4, offset = 0x4, fixed_abs, tag = 'smem constant byte address 0x4 - core index']
  #allocation1 [shape = 'u32[144,128]{1,0:T(1,128)}', space=vmem, size = 0x12000, scoped, tag = 'internal scratch']
  #allocation2 [shape = 'f32[1,1]{1,0:T(1,128)S(1)}', space=vmem, size = 0x200, scoped, tag = 'scoped memory for tpu_custom_call.1']
  %s0 = inlined_call_operand.hbm [shape: f32[2,8,768], index: 0, kind: input, shape index: {}]
  %s1 = inlined_call_operand.hbm [shape: f32[2,8,768], index: 1, kind: input, shape index: {}]
  %s2 = inlined_call_operand.hbm [shape: f32[2,8,768], index: 2, kind: input, shape index: {}]
  %s3 = inlined_call_operand.hbm [shape: bf16[768,512], index: 3, kind: input, shape index: {}]
  %s4 = inlined_call_operand.vmem [shape: f32[1,512], index: 4, kind: input, shape index: {}]
  %s5 = inlined_call_operand.vmem [shape: f32[1,512], index: 5, kind: input, shape index: {}]
  %s6 = inlined_call_operand.<no memory space> [shape: f32[1,1], index: 6, kind: input, shape index: {}]
  %s7 = inlined_call_operand.hbm [shape: f32[2,8,768], index: 7, kind: output, shape index: {0}]
  %s8 = inlined_call_operand.hbm [shape: f32[2,8,8], index: 8, kind: output, shape index: {1}]
  %9 = xla_tuple %s7, %s8
  %s10 = sld [smem:[#allocation0]]
  $region85: #{tpu_custom_call.1} parent=0
    _
  %s12 = ssub.s32 1, %s10
  %s13 = scalar_select 0, %s12, %s10
  %v14 = vstv %s6
  %15 = vst [vmem:[#allocation2] sm:$0x1] %v14
  $region1: #{tpu_custom_call.1} parent=0
    #allocation3 [shape = 'u8[49152]{0}', space=vmem, size = 0xc000, scoped, tag = 'input window, operand 0']
    #allocation4 [shape = 's32[2]{0}', space=sflag, size = 0x8, scoped, tag = 'scoped memory for tpu_custom_call.1']
    #allocation5 [shape = 's32[2]{0}', space=sflag, size = 0x8, scoped, tag = 'scoped memory for tpu_custom_call.1']
    #allocation6 [shape = 'u8[49152]{0}', space=vmem, size = 0xc000, scoped, tag = 'input window, operand 1']
    #allocation7 [shape = 's32[2]{0}', space=sflag, size = 0x8, scoped, tag = 'scoped memory for tpu_custom_call.1']
    #allocation8 [shape = 'u8[49152]{0}', space=vmem, size = 0xc000, scoped, tag = 'input window, operand 2']
    #allocation9 [shape = 'u8[786432]{0}', space=vmem, size = 0xc0000, scoped, tag = 'input window, operand 3, single buffered']
    #allocation10 [shape = 's32[1]{0}', space=sflag, size = 0x4, scoped, tag = 'scoped memory for tpu_custom_call.1']
    #allocation11 [shape = 'u8[49152]{0}', space=vmem, size = 0xc000, scoped, tag = 'output window, operand 0']
    #allocation12 [shape = 'u8[8192]{0}', space=vmem, size = 0x2000, scoped, tag = 'output window, operand 1']
    #allocation13 [shape = 's32[2]{0}', space=sflag, size = 0x8, scoped, tag = 'scoped memory for tpu_custom_call.1']
    %16 = vsyncpa [#allocation4], 0
    %s17 = scalar_lea.sflag [#allocation4], 1
    %18 = vsyncpa %s17, 0
    %19 = vsyncpa [#allocation7], 0
    %s20 = scalar_lea.sflag [#allocation7], 1
    %21 = vsyncpa %s20, 0
    %22 = vsyncpa [#allocation10], 0
    %23 = vsyncpa [#allocation5], 0
    %s24 = scalar_lea.sflag [#allocation5], 1
    %25 = vsyncpa %s24, 0
    %26 = vsyncpa [#allocation13], 0
    %s27 = scalar_lea.sflag [#allocation13], 1
    %28 = vsyncpa %s27, 0
    loop: start=0, step=1, limit=4
    $region2: #{tpu_custom_call.1} parent=1 // loop_pre_header
      _
    $region3: #{tpu_custom_call.1} parent=1 // loop_header
      %s30 = sphi 0, %s34
      %p31 = scmp.ge.s32.totalorder %s30, 4
      %s40 = sphi 0, %s42
      %s43 = sphi 0, %s40
      %s44 = sphi 0, %s43
      %s60 = sphi 0, %s44
      %s66 = sphi 0, %s68
      %s69 = sphi 0, %s66
      %s70 = sphi 0, %s69
      %s86 = sphi 0, %s70
      %s92 = sphi 0, %s94
      %s95 = sphi 0, %s92
      %s96 = sphi 0, %s95
      %s112 = sphi 0, %s96
      %s116 = sphi 0, %s116
      %s118 = sphi 0, %s116
      %s119 = sphi 0, %s118
      %s133 = sphi 0, %s119
      %s137 = sphi 0, %s137
      %s139 = sphi 0, %s137
      %s140 = sphi 0, %s139
      %s154 = sphi 0, %s140
      %s158 = sphi 0, %s158
      %s160 = sphi 0, %s158
      %s161 = sphi 0, %s160
      %s175 = sphi 0, %s161
      %s179 = sphi 0, %s179
      %s181 = sphi 0, %s179
      %s182 = sphi 0, %s181
      %s196 = sphi 0, %s182
      %s202 = sphi 0, %s204
      %s205 = sphi 0, %s202
      %s206 = sphi 0, %s205
      %s222 = sphi 0, %s206
      %s228 = sphi 0, %s230
      %s231 = sphi 0, %s228
      %s232 = sphi 0, %s231
      %s248 = sphi 0, %s232
    $region4: #{tpu_custom_call.1} parent=1 // loop_header_branch
      %33 = sbr.rel (%p31) target = $region8
    $region5: #{tpu_custom_call.1} parent=1 // loop_body
      %s35 = ssub.s32 %s30, 1
      %s36 = ssub.s32 %s30, 2
      %s37 = sadd.s32 %s30, 1
      %s38 = ssub.s32 %s30, %s37
      %p39 = scmp.eq.s32.totalorder %s38, 0
      %s41 = sadd.s32 %s40, 1
      %s42 = scalar_select %p39, %s40, %s41
      %p45 = pneg %p39
      %p46 = scmp.eq.s32.totalorder %s30, 1
      %p47 = por %p45, %p46
      %p48 = scmp.ne.s32.totalorder %s40, %s43
      %p49 = scmp.eq.s32.totalorder %s30, 0
      %p50 = por %p48, %p49
      %p51 = scmp.ne.s32.totalorder %s40, %s43
      %p52 = scmp.eq.s32.totalorder %s35, 1
      %p53 = por %p51, %p52
      %p54 = scmp.ne.s32.totalorder %s43, %s44
      %p55 = scmp.eq.s32.totalorder %s35, 0
      %p56 = por %p54, %p55
      %p57 = scmp.ne.s32.totalorder %s43, %s44
      %p58 = scmp.eq.s32.totalorder %s36, 1
      %p59 = por %p57, %p58
      %p61 = scmp.ne.s32.totalorder %s44, %s60
      %p62 = scmp.eq.s32.totalorder %s36, 0
      %p63 = por %p61, %p62
      %s64 = ssub.s32 %s30, %s37
      %p65 = scmp.eq.s32.totalorder %s64, 0
      %s67 = sadd.s32 %s66, 1
      %s68 = scalar_select %p65, %s66, %s67
      %p71 = pneg %p65
      %p72 = scmp.eq.s32.totalorder %s30, 1
      %p73 = por %p71, %p72
      %p74 = scmp.ne.s32.totalorder %s66, %s69
      %p75 = scmp.eq.s32.totalorder %s30, 0
      %p76 = por %p74, %p75
      %p77 = scmp.ne.s32.totalorder %s66, %s69
      %p78 = scmp.eq.s32.totalorder %s35, 1
      %p79 = por %p77, %p78
      %p80 = scmp.ne.s32.totalorder %s69, %s70
      %p81 = scmp.eq.s32.totalorder %s35, 0
      %p82 = por %p80, %p81
      %p83 = scmp.ne.s32.totalorder %s69, %s70
      %p84 = scmp.eq.s32.totalorder %s36, 1
      %p85 = por %p83, %p84
      %p87 = scmp.ne.s32.totalorder %s70, %s86
      %p88 = scmp.eq.s32.totalorder %s36, 0
      %p89 = por %p87, %p88
      %s90 = ssub.s32 %s30, %s37
      %p91 = scmp.eq.s32.totalorder %s90, 0
      %s93 = sadd.s32 %s92, 1
      %s94 = scalar_select %p91, %s92, %s93
      %p97 = pneg %p91
      %p98 = scmp.eq.s32.totalorder %s30, 1
      %p99 = por %p97, %p98
      %p100 = scmp.ne.s32.totalorder %s92, %s95
      %p101 = scmp.eq.s32.totalorder %s30, 0
      %p102 = por %p100, %p101
      %p103 = scmp.ne.s32.totalorder %s92, %s95
      %p104 = scmp.eq.s32.totalorder %s35, 1
      %p105 = por %p103, %p104
      %p106 = scmp.ne.s32.totalorder %s95, %s96
      %p107 = scmp.eq.s32.totalorder %s35, 0
      %p108 = por %p106, %p107
      %p109 = scmp.ne.s32.totalorder %s95, %s96
      %p110 = scmp.eq.s32.totalorder %s36, 1
      %p111 = por %p109, %p110
      %p113 = scmp.ne.s32.totalorder %s96, %s112
      %p114 = scmp.eq.s32.totalorder %s36, 0
      %p115 = por %p113, %p114
      %s117 = sadd.s32 %s116, 1
      %p120 = scmp.eq.s32.totalorder %s30, 1
      %p121 = scmp.ne.s32.totalorder %s116, %s118
      %p122 = scmp.eq.s32.totalorder %s30, 0
      %p123 = por %p121, %p122
      %p124 = scmp.ne.s32.totalorder %s116, %s118
      %p125 = scmp.eq.s32.totalorder %s35, 1
      %p126 = por %p124, %p125
      %p127 = scmp.ne.s32.totalorder %s118, %s119
      %p128 = scmp.eq.s32.totalorder %s35, 0
      %p129 = por %p127, %p128
      %p130 = scmp.ne.s32.totalorder %s118, %s119
      %p131 = scmp.eq.s32.totalorder %s36, 1
      %p132 = por %p130, %p131
      %p134 = scmp.ne.s32.totalorder %s119, %s133
      %p135 = scmp.eq.s32.totalorder %s36, 0
      %p136 = por %p134, %p135
      %s138 = sadd.s32 %s137, 1
      %p141 = scmp.eq.s32.totalorder %s30, 1
      %p142 = scmp.ne.s32.totalorder %s137, %s139
      %p143 = scmp.eq.s32.totalorder %s30, 0
      %p144 = por %p142, %p143
      %p145 = scmp.ne.s32.totalorder %s137, %s139
      %p146 = scmp.eq.s32.totalorder %s35, 1
      %p147 = por %p145, %p146
      %p148 = scmp.ne.s32.totalorder %s139, %s140
      %p149 = scmp.eq.s32.totalorder %s35, 0
      %p150 = por %p148, %p149
      %p151 = scmp.ne.s32.totalorder %s139, %s140
      %p152 = scmp.eq.s32.totalorder %s36, 1
      %p153 = por %p151, %p152
      %p155 = scmp.ne.s32.totalorder %s140, %s154
      %p156 = scmp.eq.s32.totalorder %s36, 0
      %p157 = por %p155, %p156
      %s159 = sadd.s32 %s158, 1
      %p162 = scmp.eq.s32.totalorder %s30, 1
      %p163 = scmp.ne.s32.totalorder %s158, %s160
      %p164 = scmp.eq.s32.totalorder %s30, 0
      %p165 = por %p163, %p164
      %p166 = scmp.ne.s32.totalorder %s158, %s160
      %p167 = scmp.eq.s32.totalorder %s35, 1
      %p168 = por %p166, %p167
      %p169 = scmp.ne.s32.totalorder %s160, %s161
      %p170 = scmp.eq.s32.totalorder %s35, 0
      %p171 = por %p169, %p170
      %p172 = scmp.ne.s32.totalorder %s160, %s161
      %p173 = scmp.eq.s32.totalorder %s36, 1
      %p174 = por %p172, %p173
      %p176 = scmp.ne.s32.totalorder %s161, %s175
      %p177 = scmp.eq.s32.totalorder %s36, 0
      %p178 = por %p176, %p177
      %s180 = sadd.s32 %s179, 1
      %p183 = scmp.eq.s32.totalorder %s30, 1
      %p184 = scmp.ne.s32.totalorder %s179, %s181
      %p185 = scmp.eq.s32.totalorder %s30, 0
      %p186 = por %p184, %p185
      %p187 = scmp.ne.s32.totalorder %s179, %s181
      %p188 = scmp.eq.s32.totalorder %s35, 1
      %p189 = por %p187, %p188
      %p190 = scmp.ne.s32.totalorder %s181, %s182
      %p191 = scmp.eq.s32.totalorder %s35, 0
      %p192 = por %p190, %p191
      %p193 = scmp.ne.s32.totalorder %s181, %s182
      %p194 = scmp.eq.s32.totalorder %s36, 1
      %p195 = por %p193, %p194
      %p197 = scmp.ne.s32.totalorder %s182, %s196
      %p198 = scmp.eq.s32.totalorder %s36, 0
      %p199 = por %p197, %p198
      %s200 = ssub.s32 %s30, %s37
      %p201 = scmp.eq.s32.totalorder %s200, 0
      %s203 = sadd.s32 %s202, 1
      %s204 = scalar_select %p201, %s202, %s203
      %p207 = pneg %p201
      %p208 = scmp.eq.s32.totalorder %s30, 1
      %p209 = por %p207, %p208
      %p210 = scmp.ne.s32.totalorder %s202, %s205
      %p211 = scmp.eq.s32.totalorder %s30, 0
      %p212 = por %p210, %p211
      %p213 = scmp.ne.s32.totalorder %s202, %s205
      %p214 = scmp.eq.s32.totalorder %s35, 1
      %p215 = por %p213, %p214
      %p216 = scmp.ne.s32.totalorder %s205, %s206
      %p217 = scmp.eq.s32.totalorder %s35, 0
      %p218 = por %p216, %p217
      %p219 = scmp.ne.s32.totalorder %s205, %s206
      %p220 = scmp.eq.s32.totalorder %s36, 1
      %p221 = por %p219, %p220
      %p223 = scmp.ne.s32.totalorder %s206, %s222
      %p224 = scmp.eq.s32.totalorder %s36, 0
      %p225 = por %p223, %p224
      %s226 = ssub.s32 %s30, %s37
      %p227 = scmp.eq.s32.totalorder %s226, 0
      %s229 = sadd.s32 %s228, 1
      %s230 = scalar_select %p227, %s228, %s229
      %p233 = pneg %p227
      %p234 = scmp.eq.s32.totalorder %s30, 1
      %p235 = por %p233, %p234
      %p236 = scmp.ne.s32.totalorder %s228, %s231
      %p237 = scmp.eq.s32.totalorder %s30, 0
      %p238 = por %p236, %p237
      %p239 = scmp.ne.s32.totalorder %s228, %s231
      %p240 = scmp.eq.s32.totalorder %s35, 1
      %p241 = por %p239, %p240
      %p242 = scmp.ne.s32.totalorder %s231, %s232
      %p243 = scmp.eq.s32.totalorder %s35, 0
      %p244 = por %p242, %p243
      %p245 = scmp.ne.s32.totalorder %s231, %s232
      %p246 = scmp.eq.s32.totalorder %s36, 1
      %p247 = por %p245, %p246
      %p249 = scmp.ne.s32.totalorder %s232, %s248
      %p250 = scmp.eq.s32.totalorder %s36, 0
      %p251 = por %p249, %p250
      %p252 = scmp.le.s32.totalorder 1, %s30
      %p253 = scmp.lt.s32.totalorder %s30, 3
      %p254 = pnand %p252, %p253
      %p255 = pneg %p254
      // Predicated region
      $region9: #{tpu_custom_call.1} parent=5 // pred_check
        _
      $region10: #{tpu_custom_call.1} parent=5 // pred_check_branch
        %257 = sbr.rel (%p254) target = $region12
      $region11: #{tpu_custom_call.1} parent=5 // pred_region
        %s258 = ssub.s32 %s30, 1
        // Predicated region
        $region13: #{tpu_custom_call.1} parent=11 // pred_check
          %p259 = pneg %p129
        $region14: #{tpu_custom_call.1} parent=11 // pred_check_branch
          %261 = sbr.rel (%p259) target = $region16
        $region15: #{tpu_custom_call.1} parent=11 // pred_region
          %s263 = ssub.s32 24576, 24576
          %264 = vsyncadd [#allocation10], %s263
          %s265 = sshll.u32 [#allocation9], 4
          %s266 = int_to_ptr.vmem [resolvable:$true] %s265
          %271 = dma.hbm_to_vmem [thread:$0]  %s3, 24576, %s266, [#allocation10], 256, 256, 16
        $region16: #{tpu_custom_call.1} parent=11 // pred_fallthru
          _
        // Predicated region
        $region17: #{tpu_custom_call.1} parent=11 // pred_check
          %p272 = pneg %p150
        $region18: #{tpu_custom_call.1} parent=11 // pred_check_branch
          %274 = sbr.rel (%p272) target = $region20
        $region19: #{tpu_custom_call.1} parent=11 // pred_region
          _
        $region20: #{tpu_custom_call.1} parent=11 // pred_fallthru
          _
        // Predicated region
        $region21: #{tpu_custom_call.1} parent=11 // pred_check
          %p275 = pneg %p171
        $region22: #{tpu_custom_call.1} parent=11 // pred_check_branch
          %277 = sbr.rel (%p275) target = $region24
        $region23: #{tpu_custom_call.1} parent=11 // pred_region
          _
        $region24: #{tpu_custom_call.1} parent=11 // pred_fallthru
          _
        // Predicated region
        $region25: #{tpu_custom_call.1} parent=11 // pred_check
          %p278 = pneg %p192
        $region26: #{tpu_custom_call.1} parent=11 // pred_check_branch
          %280 = sbr.rel (%p278) target = $region28
        $region27: #{tpu_custom_call.1} parent=11 // pred_region
          _
        $region28: #{tpu_custom_call.1} parent=11 // pred_fallthru
          _
      $region12: #{tpu_custom_call.1} parent=5 // pred_fallthru
        _
      %p281 = scmp.lt.s32.totalorder %s30, 2
      // Predicated region
      $region29: #{tpu_custom_call.1} parent=5 // pred_check
        %p282 = pneg %p281
      $region30: #{tpu_custom_call.1} parent=5 // pred_check_branch
        %284 = sbr.rel (%p282) target = $region32
      $region31: #{tpu_custom_call.1} parent=5 // pred_region
        // Predicated region
        $region33: #{tpu_custom_call.1} parent=31 // pred_check
          %p285 = pneg %p50
        $region34: #{tpu_custom_call.1} parent=31 // pred_check_branch
          %287 = sbr.rel (%p285) target = $region36
        $region35: #{tpu_custom_call.1} parent=31 // pred_region
          %s288 = sand.u32 %s40, 1
          %s289 = scalar_lea.sflag [#allocation4], %s288
          %s290 = sand.u32 %s40, 1
          %s291 = smul.addr %s290, 48
          %s292 = scalar_lea.vmem [#allocation3], %s291
          %s294 = ssub.s32 768, 768
          %295 = vsyncadd %s289, %s294
          %s296 = smul.addr %s30, 6
          %s297 = smul.addr %s296, 128
          %s298 = scalar_lea.hbm %s0, %s297
          %s300 = sshll.u32 %s292, 4
          %s301 = int_to_ptr.vmem [resolvable:$true] %s300
          %303 = dma.hbm_to_vmem [thread:$0]  %s298, 768, %s301, %s289
        $region36: #{tpu_custom_call.1} parent=31 // pred_fallthru
          _
        // Predicated region
        $region37: #{tpu_custom_call.1} parent=31 // pred_check
          %p304 = pneg %p76
        $region38: #{tpu_custom_call.1} parent=31 // pred_check_branch
          %306 = sbr.rel (%p304) target = $region40
        $region39: #{tpu_custom_call.1} parent=31 // pred_region
          %s307 = sand.u32 %s30, 1
          %s308 = scalar_lea.sflag [#allocation7], %s307
          %s309 = sand.u32 %s66, 1
          %s310 = smul.addr %s309, 48
          %s311 = scalar_lea.vmem [#allocation6], %s310
          %s313 = ssub.s32 768, 768
          %314 = vsyncadd %s308, %s313
          %s315 = smul.addr %s30, 6
          %s316 = smul.addr %s315, 128
          %s317 = scalar_lea.hbm %s1, %s316
          %s319 = sshll.u32 %s311, 4
          %s320 = int_to_ptr.vmem [resolvable:$true] %s319
          %322 = dma.hbm_to_vmem [thread:$0]  %s317, 768, %s320, %s308
        $region40: #{tpu_custom_call.1} parent=31 // pred_fallthru
          _
        // Predicated region
        $region41: #{tpu_custom_call.1} parent=31 // pred_check
          %p323 = pneg %p102
        $region42: #{tpu_custom_call.1} parent=31 // pred_check_branch
          %325 = sbr.rel (%p323) target = $region44
        $region43: #{tpu_custom_call.1} parent=31 // pred_region
          %s326 = sand.u32 %s30, 1
          %s327 = scalar_lea.sflag [#allocation7], %s326
          %s328 = sand.u32 %s92, 1
          %s329 = smul.addr %s328, 48
          %s330 = scalar_lea.vmem [#allocation8], %s329
          %s332 = ssub.s32 768, 768
          %333 = vsyncadd %s327, %s332
          %s334 = smul.addr %s30, 6
          %s335 = smul.addr %s334, 128
          %s336 = scalar_lea.hbm %s2, %s335
          %s338 = sshll.u32 %s330, 4
          %s339 = int_to_ptr.vmem [resolvable:$true] %s338
          %341 = dma.hbm_to_vmem [thread:$0]  %s336, 768, %s339, %s327
        $region44: #{tpu_custom_call.1} parent=31 // pred_fallthru
          _
      $region32: #{tpu_custom_call.1} parent=5 // pred_fallthru
        _
      %p342 = scmp.le.s32.totalorder 1, %s30
      %p343 = scmp.lt.s32.totalorder %s30, 3
      %p344 = pnand %p342, %p343
      %p345 = pneg %p344
      // Predicated region
      $region45: #{tpu_custom_call.1} parent=5 // pred_check
        _
      $region46: #{tpu_custom_call.1} parent=5 // pred_check_branch
        %347 = sbr.rel (%p344) target = $region48
      $region47: #{tpu_custom_call.1} parent=5 // pred_region
        %s348 = ssub.s32 %s30, 1
        %s349 = sand.u32 %s43, 1
        %s350 = scalar_lea.sflag [#allocation4], %s349
        %s351 = sand.u32 %s43, 1
        %s352 = smul.addr %s351, 48
        %s353 = scalar_lea.vmem [#allocation3], %s352
        // Predicated region
        $region49: #{tpu_custom_call.1} parent=47 // pred_check
          %p354 = pneg %p56
        $region50: #{tpu_custom_call.1} parent=47 // pred_check_branch
          %356 = sbr.rel (%p354) target = $region52
        $region51: #{tpu_custom_call.1} parent=47 // pred_region
          %357 = dma.done %s350, 768
        $region52: #{tpu_custom_call.1} parent=47 // pred_fallthru
          _
        %s358 = sand.u32 %s35, 1
        %s359 = scalar_lea.sflag [#allocation7], %s358
        %s360 = sand.u32 %s69, 1
        %s361 = smul.addr %s360, 48
        %s362 = scalar_lea.vmem [#allocation6], %s361
        // Predicated region
        $region53: #{tpu_custom_call.1} parent=47 // pred_check
          %p363 = pneg %p82
        $region54: #{tpu_custom_call.1} parent=47 // pred_check_branch
          %365 = sbr.rel (%p363) target = $region56
        $region55: #{tpu_custom_call.1} parent=47 // pred_region
          %366 = dma.done %s359, 768
        $region56: #{tpu_custom_call.1} parent=47 // pred_fallthru
          _
        %s367 = sand.u32 %s35, 1
        %s368 = scalar_lea.sflag [#allocation7], %s367
        %s369 = sand.u32 %s95, 1
        %s370 = smul.addr %s369, 48
        %s371 = scalar_lea.vmem [#allocation8], %s370
        // Predicated region
        $region57: #{tpu_custom_call.1} parent=47 // pred_check
          %p372 = pneg %p108
        $region58: #{tpu_custom_call.1} parent=47 // pred_check_branch
          %374 = sbr.rel (%p372) target = $region60
        $region59: #{tpu_custom_call.1} parent=47 // pred_region
          %375 = dma.done %s368, 768
        $region60: #{tpu_custom_call.1} parent=47 // pred_fallthru
          _
        // Predicated region
        $region61: #{tpu_custom_call.1} parent=47 // pred_check
          %p376 = pneg %p129
        $region62: #{tpu_custom_call.1} parent=47 // pred_check_branch
          %378 = sbr.rel (%p376) target = $region64
        $region63: #{tpu_custom_call.1} parent=47 // pred_region
          %379 = dma.done [#allocation10], 24576
        $region64: #{tpu_custom_call.1} parent=47 // pred_fallthru
          _
        %s380 = sand.u32 %s43, 1
        %s381 = scalar_lea.sflag [#allocation4], %s380
        %s382 = sand.u32 %s43, 1
        %s383 = smul.addr %s382, 48
        %s384 = scalar_lea.vmem [#allocation3], %s383
        %p385 = pneg %p56
        %p386 = pneg %p53
        %s387 = sand.u32 %s35, 1
        %s388 = scalar_lea.sflag [#allocation7], %s387
        %s389 = sand.u32 %s69, 1
        %s390 = smul.addr %s389, 48
        %s391 = scalar_lea.vmem [#allocation6], %s390
        %p392 = pneg %p82
        %p393 = pneg %p79
        %s394 = sand.u32 %s35, 1
        %s395 = scalar_lea.sflag [#allocation7], %s394
        %s396 = sand.u32 %s95, 1
        %s397 = smul.addr %s396, 48
        %s398 = scalar_lea.vmem [#allocation8], %s397
        %p399 = pneg %p108
        %p400 = pneg %p105
        %p401 = pneg %p129
        %p402 = pneg %p126
        %p403 = pneg %p150
        %p404 = pneg %p147
        %p405 = pneg %p171
        %p406 = pneg %p168
        %p407 = pneg %p192
        %p408 = pneg %p189
        %p409 = pneg %p218
        %p410 = pneg %p215
        %s411 = sand.u32 %s205, 1
        %s412 = scalar_lea.sflag [#allocation5], %s411
        %s413 = sand.u32 %s205, 1
        %s414 = smul.addr %s413, 48
        %s415 = scalar_lea.vmem [#allocation11], %s414
        %p416 = pneg %p244
        %p417 = pneg %p241
        %s418 = sand.u32 %s231, 1
        %s419 = scalar_lea.sflag [#allocation13], %s418
        %s420 = sand.u32 %s231, 1
        %s421 = smul.addr %s420, 8
        %s422 = scalar_lea.vmem [#allocation12], %s421
        %v423 = vld [vmem:[%s353] sm:$0xff]
        %v424 = vld [vmem:[%s353 + $0x8] sm:$0xff]
        %v425 = vld [vmem:[%s353 + $0x10] sm:$0xff]
        %v426 = vld [vmem:[%s353 + $0x18] sm:$0xff]
        %v427 = vld [vmem:[%s353 + $0x20] sm:$0xff]
        %v428 = vld [vmem:[%s353 + $0x28] sm:$0xff]
        %v429 = vld [vmem:[%s362] sm:$0xff]
        %v430 = vld [vmem:[%s362 + $0x8] sm:$0xff]
        %v431 = vld [vmem:[%s362 + $0x10] sm:$0xff]
        %v432 = vld [vmem:[%s362 + $0x18] sm:$0xff]
        %v433 = vld [vmem:[%s362 + $0x20] sm:$0xff]
        %v434 = vld [vmem:[%s362 + $0x28] sm:$0xff]
        %v435 = vld [vmem:[%s371] sm:$0xff]
        %v436 = vld [vmem:[%s371 + $0x8] sm:$0xff]
        %v437 = vld [vmem:[%s371 + $0x10] sm:$0xff]
        %v438 = vld [vmem:[%s371 + $0x18] sm:$0xff]
        %v439 = vld [vmem:[%s371 + $0x20] sm:$0xff]
        %v440 = vld [vmem:[%s371 + $0x28] sm:$0xff]
        %v441 = vpack.c.bf16 %v435, %v435
        %v442 = vpack.c.bf16 %v436, %v436
        %v443 = vpack.c.bf16 %v437, %v437
        %v444 = vpack.c.bf16 %v438, %v438
        %v445 = vpack.c.bf16 %v439, %v439
        %v446 = vpack.c.bf16 %v440, %v440
        %v447 = vld [vmem:[#allocation9] sm:$0xff]
        %v448 = vld [vmem:[#allocation9 + $0x8] sm:$0xff]
        %v449 = vld [vmem:[#allocation9 + $0x10] sm:$0xff]
        %v450 = vld [vmem:[#allocation9 + $0x18] sm:$0xff]
        %v451 = vld [vmem:[#allocation9 + $0x20] sm:$0xff]
        %v452 = vld [vmem:[#allocation9 + $0x28] sm:$0xff]
        %v453 = vld [vmem:[#allocation9 + $0x30] sm:$0xff]
        %v454 = vld [vmem:[#allocation9 + $0x38] sm:$0xff]
        %v455 = vld [vmem:[#allocation9 + $0x40] sm:$0xff]
        %v456 = vld [vmem:[#allocation9 + $0x48] sm:$0xff]
        %v457 = vld [vmem:[#allocation9 + $0x50] sm:$0xff]
        %v458 = vld [vmem:[#allocation9 + $0x58] sm:$0xff]
        %v459 = vld [vmem:[#allocation9 + $0x60] sm:$0xff]
        %v460 = vld [vmem:[#allocation9 + $0x68] sm:$0xff]
        %v461 = vld [vmem:[#allocation9 + $0x70] sm:$0xff]
        %v462 = vld [vmem:[#allocation9 + $0x78] sm:$0xff]
        %v463 = vld [vmem:[#allocation9 + $0x80] sm:$0xff]
        %v464 = vld [vmem:[#allocation9 + $0x88] sm:$0xff]
        %v465 = vld [vmem:[#allocation9 + $0x90] sm:$0xff]
        %v466 = vld [vmem:[#allocation9 + $0x98] sm:$0xff]
        %v467 = vld [vmem:[#allocation9 + $0xa0] sm:$0xff]
        %v468 = vld [vmem:[#allocation9 + $0xa8] sm:$0xff]
        %v469 = vld [vmem:[#allocation9 + $0xb0] sm:$0xff]
        %v470 = vld [vmem:[#allocation9 + $0xb8] sm:$0xff]
        %v471 = vld [vmem:[#allocation9 + $0xc0] sm:$0xff]
        %v472 = vld [vmem:[#allocation9 + $0xc8] sm:$0xff]
        %v473 = vld [vmem:[#allocation9 + $0xd0] sm:$0xff]
        %v474 = vld [vmem:[#allocation9 + $0xd8] sm:$0xff]
        %v475 = vld [vmem:[#allocation9 + $0xe0] sm:$0xff]
        %v476 = vld [vmem:[#allocation9 + $0xe8] sm:$0xff]
        %v477 = vld [vmem:[#allocation9 + $0xf0] sm:$0xff]
        %v478 = vld [vmem:[#allocation9 + $0xf8] sm:$0xff]
        %v479 = vld [vmem:[#allocation9 + $0x100] sm:$0xff]
        %v480 = vld [vmem:[#allocation9 + $0x108] sm:$0xff]
        %v481 = vld [vmem:[#allocation9 + $0x110] sm:$0xff]
        %v482 = vld [vmem:[#allocation9 + $0x118] sm:$0xff]
        %v483 = vld [vmem:[#allocation9 + $0x120] sm:$0xff]
        %v484 = vld [vmem:[#allocation9 + $0x128] sm:$0xff]
        %v485 = vld [vmem:[#allocation9 + $0x130] sm:$0xff]
        %v486 = vld [vmem:[#allocation9 + $0x138] sm:$0xff]
        %v487 = vld [vmem:[#allocation9 + $0x140] sm:$0xff]
        %v488 = vld [vmem:[#allocation9 + $0x148] sm:$0xff]
        %v489 = vld [vmem:[#allocation9 + $0x150] sm:$0xff]
        %v490 = vld [vmem:[#allocation9 + $0x158] sm:$0xff]
        %v491 = vld [vmem:[#allocation9 + $0x160] sm:$0xff]
        %v492 = vld [vmem:[#allocation9 + $0x168] sm:$0xff]
        %v493 = vld [vmem:[#allocation9 + $0x170] sm:$0xff]
        %v494 = vld [vmem:[#allocation9 + $0x178] sm:$0xff]
        %v495 = vld [vmem:[#allocation9 + $0x180] sm:$0xff]
        %v496 = vld [vmem:[#allocation9 + $0x188] sm:$0xff]
        %v497 = vld [vmem:[#allocation9 + $0x190] sm:$0xff]
        %v498 = vld [vmem:[#allocation9 + $0x198] sm:$0xff]
        %v499 = vld [vmem:[#allocation9 + $0x1a0] sm:$0xff]
        %v500 = vld [vmem:[#allocation9 + $0x1a8] sm:$0xff]
        %v501 = vld [vmem:[#allocation9 + $0x1b0] sm:$0xff]
        %v502 = vld [vmem:[#allocation9 + $0x1b8] sm:$0xff]
        %v503 = vld [vmem:[#allocation9 + $0x1c0] sm:$0xff]
        %v504 = vld [vmem:[#allocation9 + $0x1c8] sm:$0xff]
        %v505 = vld [vmem:[#allocation9 + $0x1d0] sm:$0xff]
        %v506 = vld [vmem:[#allocation9 + $0x1d8] sm:$0xff]
        %v507 = vld [vmem:[#allocation9 + $0x1e0] sm:$0xff]
        %v508 = vld [vmem:[#allocation9 + $0x1e8] sm:$0xff]
        %v509 = vld [vmem:[#allocation9 + $0x1f0] sm:$0xff]
        %v510 = vld [vmem:[#allocation9 + $0x1f8] sm:$0xff]
        %v511 = vld [vmem:[#allocation9 + $0x200] sm:$0xff]
        %v512 = vld [vmem:[#allocation9 + $0x208] sm:$0xff]
        %v513 = vld [vmem:[#allocation9 + $0x210] sm:$0xff]
        %v514 = vld [vmem:[#allocation9 + $0x218] sm:$0xff]
        %v515 = vld [vmem:[#allocation9 + $0x220] sm:$0xff]
        %v516 = vld [vmem:[#allocation9 + $0x228] sm:$0xff]
        %v517 = vld [vmem:[#allocation9 + $0x230] sm:$0xff]
        %v518 = vld [vmem:[#allocation9 + $0x238] sm:$0xff]
        %v519 = vld [vmem:[#allocation9 + $0x240] sm:$0xff]
        %v520 = vld [vmem:[#allocation9 + $0x248] sm:$0xff]
        %v521 = vld [vmem:[#allocation9 + $0x250] sm:$0xff]
        %v522 = vld [vmem:[#allocation9 + $0x258] sm:$0xff]
        %v523 = vld [vmem:[#allocation9 + $0x260] sm:$0xff]
        %v524 = vld [vmem:[#allocation9 + $0x268] sm:$0xff]
        %v525 = vld [vmem:[#allocation9 + $0x270] sm:$0xff]
        %v526 = vld [vmem:[#allocation9 + $0x278] sm:$0xff]
        %v527 = vld [vmem:[#allocation9 + $0x280] sm:$0xff]
        %v528 = vld [vmem:[#allocation9 + $0x288] sm:$0xff]
        %v529 = vld [vmem:[#allocation9 + $0x290] sm:$0xff]
        %v530 = vld [vmem:[#allocation9 + $0x298] sm:$0xff]
        %v531 = vld [vmem:[#allocation9 + $0x2a0] sm:$0xff]
        %v532 = vld [vmem:[#allocation9 + $0x2a8] sm:$0xff]
        %v533 = vld [vmem:[#allocation9 + $0x2b0] sm:$0xff]
        %v534 = vld [vmem:[#allocation9 + $0x2b8] sm:$0xff]
        %v535 = vld [vmem:[#allocation9 + $0x2c0] sm:$0xff]
        %v536 = vld [vmem:[#allocation9 + $0x2c8] sm:$0xff]
        %v537 = vld [vmem:[#allocation9 + $0x2d0] sm:$0xff]
        %v538 = vld [vmem:[#allocation9 + $0x2d8] sm:$0xff]
        %v539 = vld [vmem:[#allocation9 + $0x2e0] sm:$0xff]
        %v540 = vld [vmem:[#allocation9 + $0x2e8] sm:$0xff]
        %v541 = vld [vmem:[#allocation9 + $0x2f0] sm:$0xff]
        %v542 = vld [vmem:[#allocation9 + $0x2f8] sm:$0xff]
        %v543 = vld [vmem:[#allocation9 + $0x300] sm:$0xff]
        %v544 = vld [vmem:[#allocation9 + $0x308] sm:$0xff]
        %v545 = vld [vmem:[#allocation9 + $0x310] sm:$0xff]
        %v546 = vld [vmem:[#allocation9 + $0x318] sm:$0xff]
        %v547 = vld [vmem:[#allocation9 + $0x320] sm:$0xff]
        %v548 = vld [vmem:[#allocation9 + $0x328] sm:$0xff]
        %v549 = vld [vmem:[#allocation9 + $0x330] sm:$0xff]
        %v550 = vld [vmem:[#allocation9 + $0x338] sm:$0xff]
        %v551 = vld [vmem:[#allocation9 + $0x340] sm:$0xff]
        %v552 = vld [vmem:[#allocation9 + $0x348] sm:$0xff]
        %v553 = vld [vmem:[#allocation9 + $0x350] sm:$0xff]
        %v554 = vld [vmem:[#allocation9 + $0x358] sm:$0xff]
        %v555 = vld [vmem:[#allocation9 + $0x360] sm:$0xff]
        %v556 = vld [vmem:[#allocation9 + $0x368] sm:$0xff]
        %v557 = vld [vmem:[#allocation9 + $0x370] sm:$0xff]
        %v558 = vld [vmem:[#allocation9 + $0x378] sm:$0xff]
        %v559 = vld [vmem:[#allocation9 + $0x380] sm:$0xff]
        %v560 = vld [vmem:[#allocation9 + $0x388] sm:$0xff]
        %v561 = vld [vmem:[#allocation9 + $0x390] sm:$0xff]
        %v562 = vld [vmem:[#allocation9 + $0x398] sm:$0xff]
        %v563 = vld [vmem:[#allocation9 + $0x3a0] sm:$0xff]
        %v564 = vld [vmem:[#allocation9 + $0x3a8] sm:$0xff]
        %v565 = vld [vmem:[#allocation9 + $0x3b0] sm:$0xff]
        %v566 = vld [vmem:[#allocation9 + $0x3b8] sm:$0xff]
        %v567 = vld [vmem:[#allocation9 + $0x3c0] sm:$0xff]
        %v568 = vld [vmem:[#allocation9 + $0x3c8] sm:$0xff]
        %v569 = vld [vmem:[#allocation9 + $0x3d0] sm:$0xff]
        %v570 = vld [vmem:[#allocation9 + $0x3d8] sm:$0xff]
        %v571 = vld [vmem:[#allocation9 + $0x3e0] sm:$0xff]
        %v572 = vld [vmem:[#allocation9 + $0x3e8] sm:$0xff]
        %v573 = vld [vmem:[#allocation9 + $0x3f0] sm:$0xff]
        %v574 = vld [vmem:[#allocation9 + $0x3f8] sm:$0xff]
        %v575 = vld [vmem:[#allocation9 + $0x400] sm:$0xff]
        %v576 = vld [vmem:[#allocation9 + $0x408] sm:$0xff]
        %v577 = vld [vmem:[#allocation9 + $0x410] sm:$0xff]
        %v578 = vld [vmem:[#allocation9 + $0x418] sm:$0xff]
        %v579 = vld [vmem:[#allocation9 + $0x420] sm:$0xff]
        %v580 = vld [vmem:[#allocation9 + $0x428] sm:$0xff]
        %v581 = vld [vmem:[#allocation9 + $0x430] sm:$0xff]
        %v582 = vld [vmem:[#allocation9 + $0x438] sm:$0xff]
        %v583 = vld [vmem:[#allocation9 + $0x440] sm:$0xff]
        %v584 = vld [vmem:[#allocation9 + $0x448] sm:$0xff]
        %v585 = vld [vmem:[#allocation9 + $0x450] sm:$0xff]
        %v586 = vld [vmem:[#allocation9 + $0x458] sm:$0xff]
        %v587 = vld [vmem:[#allocation9 + $0x460] sm:$0xff]
        %v588 = vld [vmem:[#allocation9 + $0x468] sm:$0xff]
        %v589 = vld [vmem:[#allocation9 + $0x470] sm:$0xff]
        %v590 = vld [vmem:[#allocation9 + $0x478] sm:$0xff]
        %v591 = vld [vmem:[#allocation9 + $0x480] sm:$0xff]
        %v592 = vld [vmem:[#allocation9 + $0x488] sm:$0xff]
        %v593 = vld [vmem:[#allocation9 + $0x490] sm:$0xff]
        %v594 = vld [vmem:[#allocation9 + $0x498] sm:$0xff]
        %v595 = vld [vmem:[#allocation9 + $0x4a0] sm:$0xff]
        %v596 = vld [vmem:[#allocation9 + $0x4a8] sm:$0xff]
        %v597 = vld [vmem:[#allocation9 + $0x4b0] sm:$0xff]
        %v598 = vld [vmem:[#allocation9 + $0x4b8] sm:$0xff]
        %v599 = vld [vmem:[#allocation9 + $0x4c0] sm:$0xff]
        %v600 = vld [vmem:[#allocation9 + $0x4c8] sm:$0xff]
        %v601 = vld [vmem:[#allocation9 + $0x4d0] sm:$0xff]
        %v602 = vld [vmem:[#allocation9 + $0x4d8] sm:$0xff]
        %v603 = vld [vmem:[#allocation9 + $0x4e0] sm:$0xff]
        %v604 = vld [vmem:[#allocation9 + $0x4e8] sm:$0xff]
        %v605 = vld [vmem:[#allocation9 + $0x4f0] sm:$0xff]
        %v606 = vld [vmem:[#allocation9 + $0x4f8] sm:$0xff]
        %v607 = vld [vmem:[#allocation9 + $0x500] sm:$0xff]
        %v608 = vld [vmem:[#allocation9 + $0x508] sm:$0xff]
        %v609 = vld [vmem:[#allocation9 + $0x510] sm:$0xff]
        %v610 = vld [vmem:[#allocation9 + $0x518] sm:$0xff]
        %v611 = vld [vmem:[#allocation9 + $0x520] sm:$0xff]
        %v612 = vld [vmem:[#allocation9 + $0x528] sm:$0xff]
        %v613 = vld [vmem:[#allocation9 + $0x530] sm:$0xff]
        %v614 = vld [vmem:[#allocation9 + $0x538] sm:$0xff]
        %v615 = vld [vmem:[#allocation9 + $0x540] sm:$0xff]
        %v616 = vld [vmem:[#allocation9 + $0x548] sm:$0xff]
        %v617 = vld [vmem:[#allocation9 + $0x550] sm:$0xff]
        %v618 = vld [vmem:[#allocation9 + $0x558] sm:$0xff]
        %v619 = vld [vmem:[#allocation9 + $0x560] sm:$0xff]
        %v620 = vld [vmem:[#allocation9 + $0x568] sm:$0xff]
        %v621 = vld [vmem:[#allocation9 + $0x570] sm:$0xff]
        %v622 = vld [vmem:[#allocation9 + $0x578] sm:$0xff]
        %v623 = vld [vmem:[#allocation9 + $0x580] sm:$0xff]
        %v624 = vld [vmem:[#allocation9 + $0x588] sm:$0xff]
        %v625 = vld [vmem:[#allocation9 + $0x590] sm:$0xff]
        %v626 = vld [vmem:[#allocation9 + $0x598] sm:$0xff]
        %v627 = vld [vmem:[#allocation9 + $0x5a0] sm:$0xff]
        %v628 = vld [vmem:[#allocation9 + $0x5a8] sm:$0xff]
        %v629 = vld [vmem:[#allocation9 + $0x5b0] sm:$0xff]
        %v630 = vld [vmem:[#allocation9 + $0x5b8] sm:$0xff]
        %v631 = vld [vmem:[#allocation9 + $0x5c0] sm:$0xff]
        %v632 = vld [vmem:[#allocation9 + $0x5c8] sm:$0xff]
        %v633 = vld [vmem:[#allocation9 + $0x5d0] sm:$0xff]
        %v634 = vld [vmem:[#allocation9 + $0x5d8] sm:$0xff]
        %v635 = vld [vmem:[#allocation9 + $0x5e0] sm:$0xff]
        %v636 = vld [vmem:[#allocation9 + $0x5e8] sm:$0xff]
        %v637 = vld [vmem:[#allocation9 + $0x5f0] sm:$0xff]
        %v638 = vld [vmem:[#allocation9 + $0x5f8] sm:$0xff]
        %v639 = vld [vmem:[%s4] sm:$0xf]
        %v641 = vlaneseq
        %v642 = vshrl.u32 %v641, 7
        %v643 = vsub.s32 0, %v642
        %v644 = vrot.slane %v639, %v643
        %v645 = vlaneseq
        %v646 = vshrl.u32 %v645, 7
        %v647 = vsub.s32 1, %v646
        %v648 = vrot.slane %v639, %v647
        %v649 = vlaneseq
        %v650 = vshrl.u32 %v649, 7
        %v651 = vsub.s32 2, %v650
        %v652 = vrot.slane %v639, %v651
        %v653 = vlaneseq
        %v654 = vshrl.u32 %v653, 7
        %v655 = vsub.s32 3, %v654
        %v656 = vrot.slane %v639, %v655
        %v853 = vunpack.c.l.b16 %v447
        %v854 = vunpack.c.h.b16 %v447
        %v855 = vunpack.c.l.b16 %v448
        %v856 = vunpack.c.h.b16 %v448
        %v857 = vunpack.c.l.b16 %v449
        %v858 = vunpack.c.h.b16 %v449
        %v859 = vunpack.c.l.b16 %v450
        %v860 = vunpack.c.h.b16 %v450
        %v861 = vunpack.c.l.b16 %v451
        %v862 = vunpack.c.h.b16 %v451
        %v863 = vunpack.c.l.b16 %v452
        %v864 = vunpack.c.h.b16 %v452
        %v865 = vunpack.c.l.b16 %v453
        %v866 = vunpack.c.h.b16 %v453
        %v867 = vunpack.c.l.b16 %v454
        %v868 = vunpack.c.h.b16 %v454
        %v869 = vunpack.c.l.b16 %v455
        %v870 = vunpack.c.h.b16 %v455
        %v871 = vunpack.c.l.b16 %v456
        %v872 = vunpack.c.h.b16 %v456
        %v873 = vunpack.c.l.b16 %v457
        %v874 = vunpack.c.h.b16 %v457
        %v875 = vunpack.c.l.b16 %v458
        %v876 = vunpack.c.h.b16 %v458
        %v877 = vunpack.c.l.b16 %v459
        %v878 = vunpack.c.h.b16 %v459
        %v879 = vunpack.c.l.b16 %v460
        %v880 = vunpack.c.h.b16 %v460
        %v881 = vunpack.c.l.b16 %v461
        %v882 = vunpack.c.h.b16 %v461
        %v883 = vunpack.c.l.b16 %v462
        %v884 = vunpack.c.h.b16 %v462
        %v885 = vunpack.c.l.b16 %v463
        %v886 = vunpack.c.h.b16 %v463
        %v887 = vunpack.c.l.b16 %v464
        %v888 = vunpack.c.h.b16 %v464
        %v889 = vunpack.c.l.b16 %v465
        %v890 = vunpack.c.h.b16 %v465
        %v891 = vunpack.c.l.b16 %v466
        %v892 = vunpack.c.h.b16 %v466
        %v893 = vunpack.c.l.b16 %v467
        %v894 = vunpack.c.h.b16 %v467
        %v895 = vunpack.c.l.b16 %v468
        %v896 = vunpack.c.h.b16 %v468
        %v897 = vunpack.c.l.b16 %v469
        %v898 = vunpack.c.h.b16 %v469
        %v899 = vunpack.c.l.b16 %v470
        %v900 = vunpack.c.h.b16 %v470
        %v901 = vunpack.c.l.b16 %v471
        %v902 = vunpack.c.h.b16 %v471
        %v903 = vunpack.c.l.b16 %v472
        %v904 = vunpack.c.h.b16 %v472
        %v905 = vunpack.c.l.b16 %v473
        %v906 = vunpack.c.h.b16 %v473
        %v907 = vunpack.c.l.b16 %v474
        %v908 = vunpack.c.h.b16 %v474
        %v909 = vunpack.c.l.b16 %v475
        %v910 = vunpack.c.h.b16 %v475
        %v911 = vunpack.c.l.b16 %v476
        %v912 = vunpack.c.h.b16 %v476
        %v913 = vunpack.c.l.b16 %v477
        %v914 = vunpack.c.h.b16 %v477
        %v915 = vunpack.c.l.b16 %v478
        %v916 = vunpack.c.h.b16 %v478
        %v917 = vunpack.c.l.b16 %v479
        %v918 = vunpack.c.h.b16 %v479
        %v919 = vunpack.c.l.b16 %v480
        %v920 = vunpack.c.h.b16 %v480
        %v921 = vunpack.c.l.b16 %v481
        %v922 = vunpack.c.h.b16 %v481
        %v923 = vunpack.c.l.b16 %v482
        %v924 = vunpack.c.h.b16 %v482
        %v925 = vunpack.c.l.b16 %v483
        %v926 = vunpack.c.h.b16 %v483
        %v927 = vunpack.c.l.b16 %v484
        %v928 = vunpack.c.h.b16 %v484
        %v929 = vunpack.c.l.b16 %v485
        %v930 = vunpack.c.h.b16 %v485
        %v931 = vunpack.c.l.b16 %v486
        %v932 = vunpack.c.h.b16 %v486
        %v933 = vunpack.c.l.b16 %v487
        %v934 = vunpack.c.h.b16 %v487
        %v935 = vunpack.c.l.b16 %v488
        %v936 = vunpack.c.h.b16 %v488
        %v937 = vunpack.c.l.b16 %v489
        %v938 = vunpack.c.h.b16 %v489
        %v939 = vunpack.c.l.b16 %v490
        %v940 = vunpack.c.h.b16 %v490
        %v941 = vunpack.c.l.b16 %v491
        %v942 = vunpack.c.h.b16 %v491
        %v943 = vunpack.c.l.b16 %v492
        %v944 = vunpack.c.h.b16 %v492
        %v945 = vunpack.c.l.b16 %v493
        %v946 = vunpack.c.h.b16 %v493
        %v947 = vunpack.c.l.b16 %v494
        %v948 = vunpack.c.h.b16 %v494
        %v949 = vunpack.c.l.b16 %v495
        %v950 = vunpack.c.h.b16 %v495
        %v951 = vunpack.c.l.b16 %v496
        %v952 = vunpack.c.h.b16 %v496
        %v953 = vunpack.c.l.b16 %v497
        %v954 = vunpack.c.h.b16 %v497
        %v955 = vunpack.c.l.b16 %v498
        %v956 = vunpack.c.h.b16 %v498
        %v957 = vunpack.c.l.b16 %v499
        %v958 = vunpack.c.h.b16 %v499
        %v959 = vunpack.c.l.b16 %v500
        %v960 = vunpack.c.h.b16 %v500
        %v961 = vunpack.c.l.b16 %v501
        %v962 = vunpack.c.h.b16 %v501
        %v963 = vunpack.c.l.b16 %v502
        %v964 = vunpack.c.h.b16 %v502
        %v965 = vunpack.c.l.b16 %v503
        %v966 = vunpack.c.h.b16 %v503
        %v967 = vunpack.c.l.b16 %v504
        %v968 = vunpack.c.h.b16 %v504
        %v969 = vunpack.c.l.b16 %v505
        %v970 = vunpack.c.h.b16 %v505
        %v971 = vunpack.c.l.b16 %v506
        %v972 = vunpack.c.h.b16 %v506
        %v973 = vunpack.c.l.b16 %v507
        %v974 = vunpack.c.h.b16 %v507
        %v975 = vunpack.c.l.b16 %v508
        %v976 = vunpack.c.h.b16 %v508
        %v977 = vunpack.c.l.b16 %v509
        %v978 = vunpack.c.h.b16 %v509
        %v979 = vunpack.c.l.b16 %v510
        %v980 = vunpack.c.h.b16 %v510
        %v981 = vunpack.c.l.b16 %v511
        %v982 = vunpack.c.h.b16 %v511
        %v983 = vunpack.c.l.b16 %v512
        %v984 = vunpack.c.h.b16 %v512
        %v985 = vunpack.c.l.b16 %v513
        %v986 = vunpack.c.h.b16 %v513
        %v987 = vunpack.c.l.b16 %v514
        %v988 = vunpack.c.h.b16 %v514
        %v989 = vunpack.c.l.b16 %v515
        %v990 = vunpack.c.h.b16 %v515
        %v991 = vunpack.c.l.b16 %v516
        %v992 = vunpack.c.h.b16 %v516
        %v993 = vunpack.c.l.b16 %v517
        %v994 = vunpack.c.h.b16 %v517
        %v995 = vunpack.c.l.b16 %v518
        %v996 = vunpack.c.h.b16 %v518
        %v997 = vunpack.c.l.b16 %v519
        %v998 = vunpack.c.h.b16 %v519
        %v999 = vunpack.c.l.b16 %v520
        %v1000 = vunpack.c.h.b16 %v520
        %v1001 = vunpack.c.l.b16 %v521
        %v1002 = vunpack.c.h.b16 %v521
        %v1003 = vunpack.c.l.b16 %v522
        %v1004 = vunpack.c.h.b16 %v522
        %v1005 = vunpack.c.l.b16 %v523
        %v1006 = vunpack.c.h.b16 %v523
        %v1007 = vunpack.c.l.b16 %v524
        %v1008 = vunpack.c.h.b16 %v524
        %v1009 = vunpack.c.l.b16 %v525
        %v1010 = vunpack.c.h.b16 %v525
        %v1011 = vunpack.c.l.b16 %v526
        %v1012 = vunpack.c.h.b16 %v526
        %v1013 = vunpack.c.l.b16 %v527
        %v1014 = vunpack.c.h.b16 %v527
        %v1015 = vunpack.c.l.b16 %v528
        %v1016 = vunpack.c.h.b16 %v528
        %v1017 = vunpack.c.l.b16 %v529
        %v1018 = vunpack.c.h.b16 %v529
        %v1019 = vunpack.c.l.b16 %v530
        %v1020 = vunpack.c.h.b16 %v530
        %v1021 = vunpack.c.l.b16 %v531
        %v1022 = vunpack.c.h.b16 %v531
        %v1023 = vunpack.c.l.b16 %v532
        %v1024 = vunpack.c.h.b16 %v532
        %v1025 = vunpack.c.l.b16 %v533
        %v1026 = vunpack.c.h.b16 %v533
        %v1027 = vunpack.c.l.b16 %v534
        %v1028 = vunpack.c.h.b16 %v534
        %v1029 = vunpack.c.l.b16 %v535
        %v1030 = vunpack.c.h.b16 %v535
        %v1031 = vunpack.c.l.b16 %v536
        %v1032 = vunpack.c.h.b16 %v536
        %v1033 = vunpack.c.l.b16 %v537
        %v1034 = vunpack.c.h.b16 %v537
        %v1035 = vunpack.c.l.b16 %v538
        %v1036 = vunpack.c.h.b16 %v538
        %v1037 = vunpack.c.l.b16 %v539
        %v1038 = vunpack.c.h.b16 %v539
        %v1039 = vunpack.c.l.b16 %v540
        %v1040 = vunpack.c.h.b16 %v540
        %v1041 = vunpack.c.l.b16 %v541
        %v1042 = vunpack.c.h.b16 %v541
        %v1043 = vunpack.c.l.b16 %v542
        %v1044 = vunpack.c.h.b16 %v542
        %v1045 = vunpack.c.l.b16 %v543
        %v1046 = vunpack.c.h.b16 %v543
        %v1047 = vunpack.c.l.b16 %v544
        %v1048 = vunpack.c.h.b16 %v544
        %v1049 = vunpack.c.l.b16 %v545
        %v1050 = vunpack.c.h.b16 %v545
        %v1051 = vunpack.c.l.b16 %v546
        %v1052 = vunpack.c.h.b16 %v546
        %v1053 = vunpack.c.l.b16 %v547
        %v1054 = vunpack.c.h.b16 %v547
        %v1055 = vunpack.c.l.b16 %v548
        %v1056 = vunpack.c.h.b16 %v548
        %v1057 = vunpack.c.l.b16 %v549
        %v1058 = vunpack.c.h.b16 %v549
        %v1059 = vunpack.c.l.b16 %v550
        %v1060 = vunpack.c.h.b16 %v550
        %v1061 = vunpack.c.l.b16 %v551
        %v1062 = vunpack.c.h.b16 %v551
        %v1063 = vunpack.c.l.b16 %v552
        %v1064 = vunpack.c.h.b16 %v552
        %v1065 = vunpack.c.l.b16 %v553
        %v1066 = vunpack.c.h.b16 %v553
        %v1067 = vunpack.c.l.b16 %v554
        %v1068 = vunpack.c.h.b16 %v554
        %v1069 = vunpack.c.l.b16 %v555
        %v1070 = vunpack.c.h.b16 %v555
        %v1071 = vunpack.c.l.b16 %v556
        %v1072 = vunpack.c.h.b16 %v556
        %v1073 = vunpack.c.l.b16 %v557
        %v1074 = vunpack.c.h.b16 %v557
        %v1075 = vunpack.c.l.b16 %v558
        %v1076 = vunpack.c.h.b16 %v558
        %v1077 = vunpack.c.l.b16 %v559
        %v1078 = vunpack.c.h.b16 %v559
        %v1079 = vunpack.c.l.b16 %v560
        %v1080 = vunpack.c.h.b16 %v560
        %v1081 = vunpack.c.l.b16 %v561
        %v1082 = vunpack.c.h.b16 %v561
        %v1083 = vunpack.c.l.b16 %v562
        %v1084 = vunpack.c.h.b16 %v562
        %v1085 = vunpack.c.l.b16 %v563
        %v1086 = vunpack.c.h.b16 %v563
        %v1087 = vunpack.c.l.b16 %v564
        %v1088 = vunpack.c.h.b16 %v564
        %v1089 = vunpack.c.l.b16 %v565
        %v1090 = vunpack.c.h.b16 %v565
        %v1091 = vunpack.c.l.b16 %v566
        %v1092 = vunpack.c.h.b16 %v566
        %v1093 = vunpack.c.l.b16 %v567
        %v1094 = vunpack.c.h.b16 %v567
        %v1095 = vunpack.c.l.b16 %v568
        %v1096 = vunpack.c.h.b16 %v568
        %v1097 = vunpack.c.l.b16 %v569
        %v1098 = vunpack.c.h.b16 %v569
        %v1099 = vunpack.c.l.b16 %v570
        %v1100 = vunpack.c.h.b16 %v570
        %v1101 = vunpack.c.l.b16 %v571
        %v1102 = vunpack.c.h.b16 %v571
        %v1103 = vunpack.c.l.b16 %v572
        %v1104 = vunpack.c.h.b16 %v572
        %v1105 = vunpack.c.l.b16 %v573
        %v1106 = vunpack.c.h.b16 %v573
        %v1107 = vunpack.c.l.b16 %v574
        %v1108 = vunpack.c.h.b16 %v574
        %v1109 = vunpack.c.l.b16 %v575
        %v1110 = vunpack.c.h.b16 %v575
        %v1111 = vunpack.c.l.b16 %v576
        %v1112 = vunpack.c.h.b16 %v576
        %v1113 = vunpack.c.l.b16 %v577
        %v1114 = vunpack.c.h.b16 %v577
        %v1115 = vunpack.c.l.b16 %v578
        %v1116 = vunpack.c.h.b16 %v578
        %v1117 = vunpack.c.l.b16 %v579
        %v1118 = vunpack.c.h.b16 %v579
        %v1119 = vunpack.c.l.b16 %v580
        %v1120 = vunpack.c.h.b16 %v580
        %v1121 = vunpack.c.l.b16 %v581
        %v1122 = vunpack.c.h.b16 %v581
        %v1123 = vunpack.c.l.b16 %v582
        %v1124 = vunpack.c.h.b16 %v582
        %v1125 = vunpack.c.l.b16 %v583
        %v1126 = vunpack.c.h.b16 %v583
        %v1127 = vunpack.c.l.b16 %v584
        %v1128 = vunpack.c.h.b16 %v584
        %v1129 = vunpack.c.l.b16 %v585
        %v1130 = vunpack.c.h.b16 %v585
        %v1131 = vunpack.c.l.b16 %v586
        %v1132 = vunpack.c.h.b16 %v586
        %v1133 = vunpack.c.l.b16 %v587
        %v1134 = vunpack.c.h.b16 %v587
        %v1135 = vunpack.c.l.b16 %v588
        %v1136 = vunpack.c.h.b16 %v588
        %v1137 = vunpack.c.l.b16 %v589
        %v1138 = vunpack.c.h.b16 %v589
        %v1139 = vunpack.c.l.b16 %v590
        %v1140 = vunpack.c.h.b16 %v590
        %v1141 = vunpack.c.l.b16 %v591
        %v1142 = vunpack.c.h.b16 %v591
        %v1143 = vunpack.c.l.b16 %v592
        %v1144 = vunpack.c.h.b16 %v592
        %v1145 = vunpack.c.l.b16 %v593
        %v1146 = vunpack.c.h.b16 %v593
        %v1147 = vunpack.c.l.b16 %v594
        %v1148 = vunpack.c.h.b16 %v594
        %v1149 = vunpack.c.l.b16 %v595
        %v1150 = vunpack.c.h.b16 %v595
        %v1151 = vunpack.c.l.b16 %v596
        %v1152 = vunpack.c.h.b16 %v596
        %v1153 = vunpack.c.l.b16 %v597
        %v1154 = vunpack.c.h.b16 %v597
        %v1155 = vunpack.c.l.b16 %v598
        %v1156 = vunpack.c.h.b16 %v598
        %v1157 = vunpack.c.l.b16 %v599
        %v1158 = vunpack.c.h.b16 %v599
        %v1159 = vunpack.c.l.b16 %v600
        %v1160 = vunpack.c.h.b16 %v600
        %v1161 = vunpack.c.l.b16 %v601
        %v1162 = vunpack.c.h.b16 %v601
        %v1163 = vunpack.c.l.b16 %v602
        %v1164 = vunpack.c.h.b16 %v602
        %v1165 = vunpack.c.l.b16 %v603
        %v1166 = vunpack.c.h.b16 %v603
        %v1167 = vunpack.c.l.b16 %v604
        %v1168 = vunpack.c.h.b16 %v604
        %v1169 = vunpack.c.l.b16 %v605
        %v1170 = vunpack.c.h.b16 %v605
        %v1171 = vunpack.c.l.b16 %v606
        %v1172 = vunpack.c.h.b16 %v606
        %v1173 = vunpack.c.l.b16 %v607
        %v1174 = vunpack.c.h.b16 %v607
        %v1175 = vunpack.c.l.b16 %v608
        %v1176 = vunpack.c.h.b16 %v608
        %v1177 = vunpack.c.l.b16 %v609
        %v1178 = vunpack.c.h.b16 %v609
        %v1179 = vunpack.c.l.b16 %v610
        %v1180 = vunpack.c.h.b16 %v610
        %v1181 = vunpack.c.l.b16 %v611
        %v1182 = vunpack.c.h.b16 %v611
        %v1183 = vunpack.c.l.b16 %v612
        %v1184 = vunpack.c.h.b16 %v612
        %v1185 = vunpack.c.l.b16 %v613
        %v1186 = vunpack.c.h.b16 %v613
        %v1187 = vunpack.c.l.b16 %v614
        %v1188 = vunpack.c.h.b16 %v614
        %v1189 = vunpack.c.l.b16 %v615
        %v1190 = vunpack.c.h.b16 %v615
        %v1191 = vunpack.c.l.b16 %v616
        %v1192 = vunpack.c.h.b16 %v616
        %v1193 = vunpack.c.l.b16 %v617
        %v1194 = vunpack.c.h.b16 %v617
        %v1195 = vunpack.c.l.b16 %v618
        %v1196 = vunpack.c.h.b16 %v618
        %v1197 = vunpack.c.l.b16 %v619
        %v1198 = vunpack.c.h.b16 %v619
        %v1199 = vunpack.c.l.b16 %v620
        %v1200 = vunpack.c.h.b16 %v620
        %v1201 = vunpack.c.l.b16 %v621
        %v1202 = vunpack.c.h.b16 %v621
        %v1203 = vunpack.c.l.b16 %v622
        %v1204 = vunpack.c.h.b16 %v622
        %v1205 = vunpack.c.l.b16 %v623
        %v1206 = vunpack.c.h.b16 %v623
        %v1207 = vunpack.c.l.b16 %v624
        %v1208 = vunpack.c.h.b16 %v624
        %v1209 = vunpack.c.l.b16 %v625
        %v1210 = vunpack.c.h.b16 %v625
        %v1211 = vunpack.c.l.b16 %v626
        %v1212 = vunpack.c.h.b16 %v626
        %v1213 = vunpack.c.l.b16 %v627
        %v1214 = vunpack.c.h.b16 %v627
        %v1215 = vunpack.c.l.b16 %v628
        %v1216 = vunpack.c.h.b16 %v628
        %v1217 = vunpack.c.l.b16 %v629
        %v1218 = vunpack.c.h.b16 %v629
        %v1219 = vunpack.c.l.b16 %v630
        %v1220 = vunpack.c.h.b16 %v630
        %v1221 = vunpack.c.l.b16 %v631
        %v1222 = vunpack.c.h.b16 %v631
        %v1223 = vunpack.c.l.b16 %v632
        %v1224 = vunpack.c.h.b16 %v632
        %v1225 = vunpack.c.l.b16 %v633
        %v1226 = vunpack.c.h.b16 %v633
        %v1227 = vunpack.c.l.b16 %v634
        %v1228 = vunpack.c.h.b16 %v634
        %v1229 = vunpack.c.l.b16 %v635
        %v1230 = vunpack.c.h.b16 %v635
        %v1231 = vunpack.c.l.b16 %v636
        %v1232 = vunpack.c.h.b16 %v636
        %v1233 = vunpack.c.l.b16 %v637
        %v1234 = vunpack.c.h.b16 %v637
        %v1235 = vunpack.c.l.b16 %v638
        %v1236 = vunpack.c.h.b16 %v638
        %v1237 = vpack.c.b16 %v857, %v853
        %v1238 = vpack.c.b16 %v858, %v854
        %v1239 = vpack.c.b16 %v859, %v855
        %v1240 = vpack.c.b16 %v860, %v856
        %v1241 = vpack.c.b16 %v865, %v861
        %v1242 = vpack.c.b16 %v866, %v862
        %v1243 = vpack.c.b16 %v867, %v863
        %v1244 = vpack.c.b16 %v868, %v864
        %v1245 = vpack.c.b16 %v873, %v869
        %v1246 = vpack.c.b16 %v874, %v870
        %v1247 = vpack.c.b16 %v875, %v871
        %v1248 = vpack.c.b16 %v876, %v872
        %v1249 = vpack.c.b16 %v881, %v877
        %v1250 = vpack.c.b16 %v882, %v878
        %v1251 = vpack.c.b16 %v883, %v879
        %v1252 = vpack.c.b16 %v884, %v880
        %v1253 = vpack.c.b16 %v889, %v885
        %v1254 = vpack.c.b16 %v890, %v886
        %v1255 = vpack.c.b16 %v891, %v887
        %v1256 = vpack.c.b16 %v892, %v888
        %v1257 = vpack.c.b16 %v897, %v893
        %v1258 = vpack.c.b16 %v898, %v894
        %v1259 = vpack.c.b16 %v899, %v895
        %v1260 = vpack.c.b16 %v900, %v896
        %v1261 = vpack.c.b16 %v905, %v901
        %v1262 = vpack.c.b16 %v906, %v902
        %v1263 = vpack.c.b16 %v907, %v903
        %v1264 = vpack.c.b16 %v908, %v904
        %v1265 = vpack.c.b16 %v913, %v909
        %v1266 = vpack.c.b16 %v914, %v910
        %v1267 = vpack.c.b16 %v915, %v911
        %v1268 = vpack.c.b16 %v916, %v912
        %v1269 = vpack.c.b16 %v921, %v917
        %v1270 = vpack.c.b16 %v922, %v918
        %v1271 = vpack.c.b16 %v923, %v919
        %v1272 = vpack.c.b16 %v924, %v920
        %v1273 = vpack.c.b16 %v929, %v925
        %v1274 = vpack.c.b16 %v930, %v926
        %v1275 = vpack.c.b16 %v931, %v927
        %v1276 = vpack.c.b16 %v932, %v928
        %v1277 = vpack.c.b16 %v937, %v933
        %v1278 = vpack.c.b16 %v938, %v934
        %v1279 = vpack.c.b16 %v939, %v935
        %v1280 = vpack.c.b16 %v940, %v936
        %v1281 = vpack.c.b16 %v945, %v941
        %v1282 = vpack.c.b16 %v946, %v942
        %v1283 = vpack.c.b16 %v947, %v943
        %v1284 = vpack.c.b16 %v948, %v944
        %v1285 = vpack.c.b16 %v953, %v949
        %v1286 = vpack.c.b16 %v954, %v950
        %v1287 = vpack.c.b16 %v955, %v951
        %v1288 = vpack.c.b16 %v956, %v952
        %v1289 = vpack.c.b16 %v961, %v957
        %v1290 = vpack.c.b16 %v962, %v958
        %v1291 = vpack.c.b16 %v963, %v959
        %v1292 = vpack.c.b16 %v964, %v960
        %v1293 = vpack.c.b16 %v969, %v965
        %v1294 = vpack.c.b16 %v970, %v966
        %v1295 = vpack.c.b16 %v971, %v967
        %v1296 = vpack.c.b16 %v972, %v968
        %v1297 = vpack.c.b16 %v977, %v973
        %v1298 = vpack.c.b16 %v978, %v974
        %v1299 = vpack.c.b16 %v979, %v975
        %v1300 = vpack.c.b16 %v980, %v976
        %v1301 = vpack.c.b16 %v985, %v981
        %v1302 = vpack.c.b16 %v986, %v982
        %v1303 = vpack.c.b16 %v987, %v983
        %v1304 = vpack.c.b16 %v988, %v984
        %v1305 = vpack.c.b16 %v993, %v989
        %v1306 = vpack.c.b16 %v994, %v990
        %v1307 = vpack.c.b16 %v995, %v991
        %v1308 = vpack.c.b16 %v996, %v992
        %v1309 = vpack.c.b16 %v1001, %v997
        %v1310 = vpack.c.b16 %v1002, %v998
        %v1311 = vpack.c.b16 %v1003, %v999
        %v1312 = vpack.c.b16 %v1004, %v1000
        %v1313 = vpack.c.b16 %v1009, %v1005
        %v1314 = vpack.c.b16 %v1010, %v1006
        %v1315 = vpack.c.b16 %v1011, %v1007
        %v1316 = vpack.c.b16 %v1012, %v1008
        %v1317 = vpack.c.b16 %v1017, %v1013
        %v1318 = vpack.c.b16 %v1018, %v1014
        %v1319 = vpack.c.b16 %v1019, %v1015
        %v1320 = vpack.c.b16 %v1020, %v1016
        %v1321 = vpack.c.b16 %v1025, %v1021
        %v1322 = vpack.c.b16 %v1026, %v1022
        %v1323 = vpack.c.b16 %v1027, %v1023
        %v1324 = vpack.c.b16 %v1028, %v1024
        %v1325 = vpack.c.b16 %v1033, %v1029
        %v1326 = vpack.c.b16 %v1034, %v1030
        %v1327 = vpack.c.b16 %v1035, %v1031
        %v1328 = vpack.c.b16 %v1036, %v1032
        %v1329 = vpack.c.b16 %v1041, %v1037
        %v1330 = vpack.c.b16 %v1042, %v1038
        %v1331 = vpack.c.b16 %v1043, %v1039
        %v1332 = vpack.c.b16 %v1044, %v1040
        %v1333 = vpack.c.b16 %v1049, %v1045
        %v1334 = vpack.c.b16 %v1050, %v1046
        %v1335 = vpack.c.b16 %v1051, %v1047
        %v1336 = vpack.c.b16 %v1052, %v1048
        %v1337 = vpack.c.b16 %v1057, %v1053
        %v1338 = vpack.c.b16 %v1058, %v1054
        %v1339 = vpack.c.b16 %v1059, %v1055
        %v1340 = vpack.c.b16 %v1060, %v1056
        %v1341 = vpack.c.b16 %v1065, %v1061
        %v1342 = vpack.c.b16 %v1066, %v1062
        %v1343 = vpack.c.b16 %v1067, %v1063
        %v1344 = vpack.c.b16 %v1068, %v1064
        %v1345 = vpack.c.b16 %v1073, %v1069
        %v1346 = vpack.c.b16 %v1074, %v1070
        %v1347 = vpack.c.b16 %v1075, %v1071
        %v1348 = vpack.c.b16 %v1076, %v1072
        %v1349 = vpack.c.b16 %v1081, %v1077
        %v1350 = vpack.c.b16 %v1082, %v1078
        %v1351 = vpack.c.b16 %v1083, %v1079
        %v1352 = vpack.c.b16 %v1084, %v1080
        %v1353 = vpack.c.b16 %v1089, %v1085
        %v1354 = vpack.c.b16 %v1090, %v1086
        %v1355 = vpack.c.b16 %v1091, %v1087
        %v1356 = vpack.c.b16 %v1092, %v1088
        %v1357 = vpack.c.b16 %v1097, %v1093
        %v1358 = vpack.c.b16 %v1098, %v1094
        %v1359 = vpack.c.b16 %v1099, %v1095
        %v1360 = vpack.c.b16 %v1100, %v1096
        %v1361 = vpack.c.b16 %v1105, %v1101
        %v1362 = vpack.c.b16 %v1106, %v1102
        %v1363 = vpack.c.b16 %v1107, %v1103
        %v1364 = vpack.c.b16 %v1108, %v1104
        %v1365 = vpack.c.b16 %v1113, %v1109
        %v1366 = vpack.c.b16 %v1114, %v1110
        %v1367 = vpack.c.b16 %v1115, %v1111
        %v1368 = vpack.c.b16 %v1116, %v1112
        %v1369 = vpack.c.b16 %v1121, %v1117
        %v1370 = vpack.c.b16 %v1122, %v1118
        %v1371 = vpack.c.b16 %v1123, %v1119
        %v1372 = vpack.c.b16 %v1124, %v1120
        %v1373 = vpack.c.b16 %v1129, %v1125
        %v1374 = vpack.c.b16 %v1130, %v1126
        %v1375 = vpack.c.b16 %v1131, %v1127
        %v1376 = vpack.c.b16 %v1132, %v1128
        %v1377 = vpack.c.b16 %v1137, %v1133
        %v1378 = vpack.c.b16 %v1138, %v1134
        %v1379 = vpack.c.b16 %v1139, %v1135
        %v1380 = vpack.c.b16 %v1140, %v1136
        %v1381 = vpack.c.b16 %v1145, %v1141
        %v1382 = vpack.c.b16 %v1146, %v1142
        %v1383 = vpack.c.b16 %v1147, %v1143
        %v1384 = vpack.c.b16 %v1148, %v1144
        %v1385 = vpack.c.b16 %v1153, %v1149
        %v1386 = vpack.c.b16 %v1154, %v1150
        %v1387 = vpack.c.b16 %v1155, %v1151
        %v1388 = vpack.c.b16 %v1156, %v1152
        %v1389 = vpack.c.b16 %v1161, %v1157
        %v1390 = vpack.c.b16 %v1162, %v1158
        %v1391 = vpack.c.b16 %v1163, %v1159
        %v1392 = vpack.c.b16 %v1164, %v1160
        %v1393 = vpack.c.b16 %v1169, %v1165
        %v1394 = vpack.c.b16 %v1170, %v1166
        %v1395 = vpack.c.b16 %v1171, %v1167
        %v1396 = vpack.c.b16 %v1172, %v1168
        %v1397 = vpack.c.b16 %v1177, %v1173
        %v1398 = vpack.c.b16 %v1178, %v1174
        %v1399 = vpack.c.b16 %v1179, %v1175
        %v1400 = vpack.c.b16 %v1180, %v1176
        %v1401 = vpack.c.b16 %v1185, %v1181
        %v1402 = vpack.c.b16 %v1186, %v1182
        %v1403 = vpack.c.b16 %v1187, %v1183
        %v1404 = vpack.c.b16 %v1188, %v1184
        %v1405 = vpack.c.b16 %v1193, %v1189
        %v1406 = vpack.c.b16 %v1194, %v1190
        %v1407 = vpack.c.b16 %v1195, %v1191
        %v1408 = vpack.c.b16 %v1196, %v1192
        %v1409 = vpack.c.b16 %v1201, %v1197
        %v1410 = vpack.c.b16 %v1202, %v1198
        %v1411 = vpack.c.b16 %v1203, %v1199
        %v1412 = vpack.c.b16 %v1204, %v1200
        %v1413 = vpack.c.b16 %v1209, %v1205
        %v1414 = vpack.c.b16 %v1210, %v1206
        %v1415 = vpack.c.b16 %v1211, %v1207
        %v1416 = vpack.c.b16 %v1212, %v1208
        %v1417 = vpack.c.b16 %v1217, %v1213
        %v1418 = vpack.c.b16 %v1218, %v1214
        %v1419 = vpack.c.b16 %v1219, %v1215
        %v1420 = vpack.c.b16 %v1220, %v1216
        %v1421 = vpack.c.b16 %v1225, %v1221
        %v1422 = vpack.c.b16 %v1226, %v1222
        %v1423 = vpack.c.b16 %v1227, %v1223
        %v1424 = vpack.c.b16 %v1228, %v1224
        %v1425 = vpack.c.b16 %v1233, %v1229
        %v1426 = vpack.c.b16 %v1234, %v1230
        %v1427 = vpack.c.b16 %v1235, %v1231
        %v1428 = vpack.c.b16 %v1236, %v1232
        %1621 = vmatprep.subr.bf16.mxu0 %v1238
        %1622 = vmatpush1.bf16.msra.mxu0 %v1237
        %1623 = vmatprep.subr.bf16.mxu0 %v1242
        %1624 = vmatpush1.bf16.msra.mxu0 %v1241
        %1625 = vmatprep.subr.bf16.mxu0 %v1246
        %1626 = vmatpush1.bf16.msra.mxu0 %v1245
        %1627 = vmatprep.subr.bf16.mxu0 %v1250
        %1628 = vmatpush1.bf16.msra.mxu0 %v1249
        %1629 = vmatprep.subr.bf16.mxu0 %v1254
        %1630 = vmatpush1.bf16.msra.mxu0 %v1253
        %1631 = vmatprep.subr.bf16.mxu0 %v1258
        %1632 = vmatpush1.bf16.msra.mxu0 %v1257
        %1633 = vmatprep.subr.bf16.mxu0 %v1262
        %1634 = vmatpush1.bf16.msra.mxu0 %v1261
        %1635 = vmatprep.subr.bf16.mxu0 %v1266
        %1636 = vmatpush1.bf16.msra.mxu0 %v1265
        %1637 = vmatprep.subr.bf16.mxu0 %v1270
        %1638 = vmatpush1.bf16.msra.mxu0 %v1269
        %1639 = vmatprep.subr.bf16.mxu0 %v1274
        %1640 = vmatpush1.bf16.msra.mxu0 %v1273
        %1641 = vmatprep.subr.bf16.mxu0 %v1278
        %1642 = vmatpush1.bf16.msra.mxu0 %v1277
        %1643 = vmatprep.subr.bf16.mxu0 %v1282
        %1644 = vmatpush1.bf16.msra.mxu0 %v1281
        %1645 = vmatprep.subr.bf16.mxu0 %v1286
        %1646 = vmatpush1.bf16.msra.mxu0 %v1285
        %1647 = vmatprep.subr.bf16.mxu0 %v1290
        %1648 = vmatpush1.bf16.msra.mxu0 %v1289
        %1649 = vmatprep.subr.bf16.mxu0 %v1294
        %1650 = vmatpush1.bf16.msra.mxu0 %v1293
        %1651 = vmatprep.subr.bf16.mxu0 %v1298
        %1652 = vmatpush1.bf16.msra.mxu0 %v1297
        %1653 = vmatprep.mubr.bf16.mxu0 %v442
        %1654 = vmatmul.mubr.bf16.gmra.mrb[0].mxu0 %v441
        %v1655 = vpop.f32.mrb[0].mxu0
        %v1656 = vadd.f32 %v644, %v1655
        %v1657 = vpop.f32.mrb[0].mxu0
        %v1658 = vadd.f32 %v648, %v1657
        %v1659 = vpop.f32.mrb[0].mxu0
        %v1660 = vpop.f32.mrb[0].mxu0
        %1661 = vdwg.mxu0
        %1662 = vmatprep.subr.bf16.mxu0 %v1302
        %1663 = vmatpush1.bf16.msra.mxu0 %v1301
        %1664 = vmatprep.subr.bf16.mxu0 %v1306
        %1665 = vmatpush1.bf16.msra.mxu0 %v1305
        %1666 = vmatprep.subr.bf16.mxu0 %v1310
        %1667 = vmatpush1.bf16.msra.mxu0 %v1309
        %1668 = vmatprep.subr.bf16.mxu0 %v1314
        %1669 = vmatpush1.bf16.msra.mxu0 %v1313
        %1670 = vmatprep.subr.bf16.mxu0 %v1318
        %1671 = vmatpush1.bf16.msra.mxu0 %v1317
        %1672 = vmatprep.subr.bf16.mxu0 %v1322
        %1673 = vmatpush1.bf16.msra.mxu0 %v1321
        %1674 = vmatprep.subr.bf16.mxu0 %v1326
        %1675 = vmatpush1.bf16.msra.mxu0 %v1325
        %1676 = vmatprep.subr.bf16.mxu0 %v1330
        %1677 = vmatpush1.bf16.msra.mxu0 %v1329
        %1678 = vmatprep.subr.bf16.mxu0 %v1334
        %1679 = vmatpush1.bf16.msra.mxu0 %v1333
        %1680 = vmatprep.subr.bf16.mxu0 %v1338
        %1681 = vmatpush1.bf16.msra.mxu0 %v1337
        %1682 = vmatprep.subr.bf16.mxu0 %v1342
        %1683 = vmatpush1.bf16.msra.mxu0 %v1341
        %1684 = vmatprep.subr.bf16.mxu0 %v1346
        %1685 = vmatpush1.bf16.msra.mxu0 %v1345
        %1686 = vmatprep.subr.bf16.mxu0 %v1350
        %1687 = vmatpush1.bf16.msra.mxu0 %v1349
        %1688 = vmatprep.subr.bf16.mxu0 %v1354
        %1689 = vmatpush1.bf16.msra.mxu0 %v1353
        %1690 = vmatprep.subr.bf16.mxu0 %v1358
        %1691 = vmatpush1.bf16.msra.mxu0 %v1357
        %1692 = vmatprep.subr.bf16.mxu0 %v1362
        %1693 = vmatpush1.bf16.msra.mxu0 %v1361
        %1694 = vmatprep.mubr.bf16.mxu0 %v444
        %1695 = vmatmul.mubr.bf16.gmra.mrb[0].mxu0 %v443
        %v1696 = vpop.f32.mrb[0].mxu0
        %v1697 = vadd.f32 %v1656, %v1696
        %v1698 = vpop.f32.mrb[0].mxu0
        %v1699 = vadd.f32 %v1658, %v1698
        %v1700 = vpop.f32.mrb[0].mxu0
        %v1701 = vpop.f32.mrb[0].mxu0
        %1702 = vdwg.mxu0
        %1703 = vmatprep.subr.bf16.mxu0 %v1366
        %1704 = vmatpush1.bf16.msra.mxu0 %v1365
        %1705 = vmatprep.subr.bf16.mxu0 %v1370
        %1706 = vmatpush1.bf16.msra.mxu0 %v1369
        %1707 = vmatprep.subr.bf16.mxu0 %v1374
        %1708 = vmatpush1.bf16.msra.mxu0 %v1373
        %1709 = vmatprep.subr.bf16.mxu0 %v1378
        %1710 = vmatpush1.bf16.msra.mxu0 %v1377
        %1711 = vmatprep.subr.bf16.mxu0 %v1382
        %1712 = vmatpush1.bf16.msra.mxu0 %v1381
        %1713 = vmatprep.subr.bf16.mxu0 %v1386
        %1714 = vmatpush1.bf16.msra.mxu0 %v1385
        %1715 = vmatprep.subr.bf16.mxu0 %v1390
        %1716 = vmatpush1.bf16.msra.mxu0 %v1389
        %1717 = vmatprep.subr.bf16.mxu0 %v1394
        %1718 = vmatpush1.bf16.msra.mxu0 %v1393
        %1719 = vmatprep.subr.bf16.mxu0 %v1398
        %1720 = vmatpush1.bf16.msra.mxu0 %v1397
        %1721 = vmatprep.subr.bf16.mxu0 %v1402
        %1722 = vmatpush1.bf16.msra.mxu0 %v1401
        %1723 = vmatprep.subr.bf16.mxu0 %v1406
        %1724 = vmatpush1.bf16.msra.mxu0 %v1405
        %1725 = vmatprep.subr.bf16.mxu0 %v1410
        %1726 = vmatpush1.bf16.msra.mxu0 %v1409
        %1727 = vmatprep.subr.bf16.mxu0 %v1414
        %1728 = vmatpush1.bf16.msra.mxu0 %v1413
        %1729 = vmatprep.subr.bf16.mxu0 %v1418
        %1730 = vmatpush1.bf16.msra.mxu0 %v1417
        %1731 = vmatprep.subr.bf16.mxu0 %v1422
        %1732 = vmatpush1.bf16.msra.mxu0 %v1421
        %1733 = vmatprep.subr.bf16.mxu0 %v1426
        %1734 = vmatpush1.bf16.msra.mxu0 %v1425
        %1735 = vmatprep.mubr.bf16.mxu0 %v446
        %1736 = vmatmul.mubr.bf16.gmra.mrb[0].mxu0 %v445
        %v1737 = vpop.f32.mrb[0].mxu0
        %v1738 = vadd.f32 %v1697, %v1737
        %v1739 = vpop.f32.mrb[0].mxu0
        %v1740 = vadd.f32 %v1699, %v1739
        %v1741 = vpop.f32.mrb[0].mxu0
        %v1742 = vpop.f32.mrb[0].mxu0
        %1743 = vdwg.mxu0
        %1744 = vmatprep.subr.bf16.mxu0 %v1240
        %1745 = vmatpush1.bf16.msra.mxu0 %v1239
        %1746 = vmatprep.subr.bf16.mxu0 %v1244
        %1747 = vmatpush1.bf16.msra.mxu0 %v1243
        %1748 = vmatprep.subr.bf16.mxu0 %v1248
        %1749 = vmatpush1.bf16.msra.mxu0 %v1247
        %1750 = vmatprep.subr.bf16.mxu0 %v1252
        %1751 = vmatpush1.bf16.msra.mxu0 %v1251
        %1752 = vmatprep.subr.bf16.mxu0 %v1256
        %1753 = vmatpush1.bf16.msra.mxu0 %v1255
        %1754 = vmatprep.subr.bf16.mxu0 %v1260
        %1755 = vmatpush1.bf16.msra.mxu0 %v1259
        %1756 = vmatprep.subr.bf16.mxu0 %v1264
        %1757 = vmatpush1.bf16.msra.mxu0 %v1263
        %1758 = vmatprep.subr.bf16.mxu0 %v1268
        %1759 = vmatpush1.bf16.msra.mxu0 %v1267
        %1760 = vmatprep.subr.bf16.mxu0 %v1272
        %1761 = vmatpush1.bf16.msra.mxu0 %v1271
        %1762 = vmatprep.subr.bf16.mxu0 %v1276
        %1763 = vmatpush1.bf16.msra.mxu0 %v1275
        %1764 = vmatprep.subr.bf16.mxu0 %v1280
        %1765 = vmatpush1.bf16.msra.mxu0 %v1279
        %1766 = vmatprep.subr.bf16.mxu0 %v1284
        %1767 = vmatpush1.bf16.msra.mxu0 %v1283
        %1768 = vmatprep.subr.bf16.mxu0 %v1288
        %1769 = vmatpush1.bf16.msra.mxu0 %v1287
        %1770 = vmatprep.subr.bf16.mxu0 %v1292
        %1771 = vmatpush1.bf16.msra.mxu0 %v1291
        %1772 = vmatprep.subr.bf16.mxu0 %v1296
        %1773 = vmatpush1.bf16.msra.mxu0 %v1295
        %1774 = vmatprep.subr.bf16.mxu0 %v1300
        %1775 = vmatpush1.bf16.msra.mxu0 %v1299
        %1776 = vmatprep.mubr.bf16.mxu0 %v442
        %1777 = vmatmul.mubr.bf16.gmra.mrb[0].mxu0 %v441
        %v1778 = vpop.f32.mrb[0].mxu0
        %v1779 = vadd.f32 %v652, %v1778
        %v1780 = vpop.f32.mrb[0].mxu0
        %v1781 = vadd.f32 %v656, %v1780
        %v1782 = vpop.f32.mrb[0].mxu0
        %v1783 = vpop.f32.mrb[0].mxu0
        %1784 = vdwg.mxu0
        %1785 = vmatprep.subr.bf16.mxu0 %v1304
        %1786 = vmatpush1.bf16.msra.mxu0 %v1303
        %1787 = vmatprep.subr.bf16.mxu0 %v1308
        %1788 = vmatpush1.bf16.msra.mxu0 %v1307
        %1789 = vmatprep.subr.bf16.mxu0 %v1312
        %1790 = vmatpush1.bf16.msra.mxu0 %v1311
        %1791 = vmatprep.subr.bf16.mxu0 %v1316
        %1792 = vmatpush1.bf16.msra.mxu0 %v1315
        %1793 = vmatprep.subr.bf16.mxu0 %v1320
        %1794 = vmatpush1.bf16.msra.mxu0 %v1319
        %1795 = vmatprep.subr.bf16.mxu0 %v1324
        %1796 = vmatpush1.bf16.msra.mxu0 %v1323
        %1797 = vmatprep.subr.bf16.mxu0 %v1328
        %1798 = vmatpush1.bf16.msra.mxu0 %v1327
        %1799 = vmatprep.subr.bf16.mxu0 %v1332
        %1800 = vmatpush1.bf16.msra.mxu0 %v1331
        %1801 = vmatprep.subr.bf16.mxu0 %v1336
        %1802 = vmatpush1.bf16.msra.mxu0 %v1335
        %1803 = vmatprep.subr.bf16.mxu0 %v1340
        %1804 = vmatpush1.bf16.msra.mxu0 %v1339
        %1805 = vmatprep.subr.bf16.mxu0 %v1344
        %1806 = vmatpush1.bf16.msra.mxu0 %v1343
        %1807 = vmatprep.subr.bf16.mxu0 %v1348
        %1808 = vmatpush1.bf16.msra.mxu0 %v1347
        %1809 = vmatprep.subr.bf16.mxu0 %v1352
        %1810 = vmatpush1.bf16.msra.mxu0 %v1351
        %1811 = vmatprep.subr.bf16.mxu0 %v1356
        %1812 = vmatpush1.bf16.msra.mxu0 %v1355
        %1813 = vmatprep.subr.bf16.mxu0 %v1360
        %1814 = vmatpush1.bf16.msra.mxu0 %v1359
        %1815 = vmatprep.subr.bf16.mxu0 %v1364
        %1816 = vmatpush1.bf16.msra.mxu0 %v1363
        %1817 = vmatprep.mubr.bf16.mxu0 %v444
        %1818 = vmatmul.mubr.bf16.gmra.mrb[0].mxu0 %v443
        %v1819 = vpop.f32.mrb[0].mxu0
        %v1820 = vadd.f32 %v1779, %v1819
        %v1821 = vpop.f32.mrb[0].mxu0
        %v1822 = vadd.f32 %v1781, %v1821
        %v1823 = vpop.f32.mrb[0].mxu0
        %v1824 = vpop.f32.mrb[0].mxu0
        %1825 = vdwg.mxu0
        %1826 = vmatprep.subr.bf16.mxu0 %v1368
        %1827 = vmatpush1.bf16.msra.mxu0 %v1367
        %1828 = vmatprep.subr.bf16.mxu0 %v1372
        %1829 = vmatpush1.bf16.msra.mxu0 %v1371
        %1830 = vmatprep.subr.bf16.mxu0 %v1376
        %1831 = vmatpush1.bf16.msra.mxu0 %v1375
        %1832 = vmatprep.subr.bf16.mxu0 %v1380
        %1833 = vmatpush1.bf16.msra.mxu0 %v1379
        %1834 = vmatprep.subr.bf16.mxu0 %v1384
        %1835 = vmatpush1.bf16.msra.mxu0 %v1383
        %1836 = vmatprep.subr.bf16.mxu0 %v1388
        %1837 = vmatpush1.bf16.msra.mxu0 %v1387
        %1838 = vmatprep.subr.bf16.mxu0 %v1392
        %1839 = vmatpush1.bf16.msra.mxu0 %v1391
        %1840 = vmatprep.subr.bf16.mxu0 %v1396
        %1841 = vmatpush1.bf16.msra.mxu0 %v1395
        %1842 = vmatprep.subr.bf16.mxu0 %v1400
        %1843 = vmatpush1.bf16.msra.mxu0 %v1399
        %1844 = vmatprep.subr.bf16.mxu0 %v1404
        %1845 = vmatpush1.bf16.msra.mxu0 %v1403
        %1846 = vmatprep.subr.bf16.mxu0 %v1408
        %1847 = vmatpush1.bf16.msra.mxu0 %v1407
        %1848 = vmatprep.subr.bf16.mxu0 %v1412
        %1849 = vmatpush1.bf16.msra.mxu0 %v1411
        %1850 = vmatprep.subr.bf16.mxu0 %v1416
        %1851 = vmatpush1.bf16.msra.mxu0 %v1415
        %1852 = vmatprep.subr.bf16.mxu0 %v1420
        %1853 = vmatpush1.bf16.msra.mxu0 %v1419
        %1854 = vmatprep.subr.bf16.mxu0 %v1424
        %1855 = vmatpush1.bf16.msra.mxu0 %v1423
        %1856 = vmatprep.subr.bf16.mxu0 %v1428
        %1857 = vmatpush1.bf16.msra.mxu0 %v1427
        %1858 = vmatprep.mubr.bf16.mxu0 %v446
        %1859 = vmatmul.mubr.bf16.gmra.mrb[0].mxu0 %v445
        %v1860 = vpop.f32.mrb[0].mxu0
        %v1861 = vadd.f32 %v1820, %v1860
        %v1862 = vpop.f32.mrb[0].mxu0
        %v1863 = vadd.f32 %v1822, %v1862
        %v1864 = vpop.f32.mrb[0].mxu0
        %v1865 = vpop.f32.mrb[0].mxu0
        %1866 = vdwg.mxu0
        %v1867 = vtanh.pop %v1738
        %v1868 = vtanh.pop %v1740
        %v1869 = vtanh.pop %v1861
        %v1870 = vtanh.pop %v1863
        %v1871 = vld [vmem:[%s5] sm:$0xf]
        %v1872 = vld [vmem:[#allocation2] sm:$0x1]
        %1874 = vset.pattern.permute.xlu0 0
        %1875 = vperm.xlu0 %1874, %v1872
        %v1876 = vpop.permute.xlu0 %1875
        %v1878 = vlaneseq
        %v1879 = vshrl.u32 %v1878, 7
        %v1880 = vsub.s32 0, %v1879
        %v1881 = vrot.slane %v1876, %v1880
        %v1883 = vlaneseq
        %v1884 = vshrl.u32 %v1883, 7
        %v1885 = vsub.s32 0, %v1884
        %v1886 = vrot.slane %v1871, %v1885
        %v1887 = vlaneseq
        %v1888 = vshrl.u32 %v1887, 7
        %v1889 = vsub.s32 1, %v1888
        %v1890 = vrot.slane %v1871, %v1889
        %v1891 = vlaneseq
        %v1892 = vshrl.u32 %v1891, 7
        %v1893 = vsub.s32 2, %v1892
        %v1894 = vrot.slane %v1871, %v1893
        %v1895 = vlaneseq
        %v1896 = vshrl.u32 %v1895, 7
        %v1897 = vsub.s32 3, %v1896
        %v1898 = vrot.slane %v1871, %v1897
        %1903 = vmatprep.subr.mxu0 %v1868
        %1904 = vmatpush1.xpose.msra.mxu0 %v1867
        %1905 = vmatprep.subr.mxu0 0.0
        %1906 = vmatpush1.xpose.msra.mxu0 0.0
        %1907 = vmatprep.subr.mxu0 0.0
        %1908 = vmatpush1.xpose.msra.mxu0 0.0
        %1909 = vmatprep.subr.mxu0 0.0
        %1910 = vmatpush1.xpose.msra.mxu0 0.0
        %1911 = vmatprep.subr.mxu0 0.0
        %1912 = vmatpush1.xpose.msra.mxu0 0.0
        %1913 = vmatprep.subr.mxu0 0.0
        %1914 = vmatpush1.xpose.msra.mxu0 0.0
        %1915 = vmatprep.subr.mxu0 0.0
        %1916 = vmatpush1.xpose.msra.mxu0 0.0
        %1917 = vmatprep.subr.mxu0 0.0
        %1918 = vmatpush1.xpose.msra.mxu0 0.0
        %1919 = vmatprep.subr.mxu0 0.0
        %1920 = vmatpush1.xpose.msra.mxu0 0.0
        %1921 = vmatprep.subr.mxu0 0.0
        %1922 = vmatpush1.xpose.msra.mxu0 0.0
        %1923 = vmatprep.subr.mxu0 0.0
        %1924 = vmatpush1.xpose.msra.mxu0 0.0
        %1925 = vmatprep.subr.mxu0 0.0
        %1926 = vmatpush1.xpose.msra.mxu0 0.0
        %1927 = vmatprep.subr.mxu0 0.0
        %1928 = vmatpush1.xpose.msra.mxu0 0.0
        %1929 = vmatprep.subr.mxu0 0.0
        %1930 = vmatpush1.xpose.msra.mxu0 0.0
        %1931 = vmatprep.subr.mxu0 0.0
        %1932 = vmatpush1.xpose.msra.mxu0 0.0
        %1933 = vmatprep.subr.mxu0 0.0
        %1934 = vmatpush1.xpose.msra.mxu0 0.0
        %1935 = vmatprep.subr.mxu0 0.0
        %1936 = vmatpush1.xpose.msra.mxu0 0.0
        %1937 = vmatprep.subr.mxu0 0.0
        %1938 = vmatpush1.xpose.msra.mxu0 0.0
        %1939 = vmatprep.subr.mxu0 0.0
        %1940 = vmatpush1.xpose.msra.mxu0 0.0
        %1941 = vmatprep.subr.mxu0 0.0
        %1942 = vmatpush1.xpose.msra.mxu0 0.0
        %1943 = vmatprep.subr.mxu0 0.0
        %1944 = vmatpush1.xpose.msra.mxu0 0.0
        %1945 = vmatprep.subr.mxu0 0.0
        %1946 = vmatpush1.xpose.msra.mxu0 0.0
        %1947 = vmatprep.subr.mxu0 0.0
        %1948 = vmatpush1.xpose.msra.mxu0 0.0
        %1949 = vmatprep.subr.mxu0 0.0
        %1950 = vmatpush1.xpose.msra.mxu0 0.0
        %1951 = vmatprep.subr.mxu0 0.0
        %1952 = vmatpush1.xpose.msra.mxu0 0.0
        %1953 = vmatprep.subr.mxu0 0.0
        %1954 = vmatpush1.xpose.msra.mxu0 0.0
        %1955 = vmatprep.subr.mxu0 0.0
        %1956 = vmatpush1.xpose.msra.mxu0 0.0
        %1957 = vmatprep.subr.mxu0 0.0
        %1958 = vmatpush1.xpose.msra.mxu0 0.0
        %1959 = vmatprep.subr.mxu0 0.0
        %1960 = vmatpush1.xpose.msra.mxu0 0.0
        %1961 = vmatprep.subr.mxu0 0.0
        %1962 = vmatpush1.xpose.msra.mxu0 0.0
        %1963 = vmatprep.subr.mxu0 0.0
        %1964 = vmatpush1.xpose.msra.mxu0 0.0
        %1965 = vmatprep.subr.mxu0 0.0
        %1966 = vmatpush1.xpose.msra.mxu0 0.0
        %1967 = vmatprep.mubr.f32.mxu0 %v1890
        %1968 = vmatmul.mubr.f32.gmra.mrb[0].mxu0 %v1886
        %v1969 = vpop.f32.mrb[0].mxu0
        %v1970 = vadd.f32 %v1881, %v1969
        %v1971 = vpop.f32.mrb[0].mxu0
        %1972 = vdwg.mxu0
        %1973 = vmatprep.subr.mxu0 %v1870
        %1974 = vmatpush1.xpose.msra.mxu0 %v1869
        %1975 = vmatprep.subr.mxu0 0.0
        %1976 = vmatpush1.xpose.msra.mxu0 0.0
        %1977 = vmatprep.subr.mxu0 0.0
        %1978 = vmatpush1.xpose.msra.mxu0 0.0
        %1979 = vmatprep.subr.mxu0 0.0
        %1980 = vmatpush1.xpose.msra.mxu0 0.0
        %1981 = vmatprep.subr.mxu0 0.0
        %1982 = vmatpush1.xpose.msra.mxu0 0.0
        %1983 = vmatprep.subr.mxu0 0.0
        %1984 = vmatpush1.xpose.msra.mxu0 0.0
        %1985 = vmatprep.subr.mxu0 0.0
        %1986 = vmatpush1.xpose.msra.mxu0 0.0
        %1987 = vmatprep.subr.mxu0 0.0
        %1988 = vmatpush1.xpose.msra.mxu0 0.0
        %1989 = vmatprep.subr.mxu0 0.0
        %1990 = vmatpush1.xpose.msra.mxu0 0.0
        %1991 = vmatprep.subr.mxu0 0.0
        %1992 = vmatpush1.xpose.msra.mxu0 0.0
        %1993 = vmatprep.subr.mxu0 0.0
        %1994 = vmatpush1.xpose.msra.mxu0 0.0
        %1995 = vmatprep.subr.mxu0 0.0
        %1996 = vmatpush1.xpose.msra.mxu0 0.0
        %1997 = vmatprep.subr.mxu0 0.0
        %1998 = vmatpush1.xpose.msra.mxu0 0.0
        %1999 = vmatprep.subr.mxu0 0.0
        %2000 = vmatpush1.xpose.msra.mxu0 0.0
        %2001 = vmatprep.subr.mxu0 0.0
        %2002 = vmatpush1.xpose.msra.mxu0 0.0
        %2003 = vmatprep.subr.mxu0 0.0
        %2004 = vmatpush1.xpose.msra.mxu0 0.0
        %2005 = vmatprep.subr.mxu0 0.0
        %2006 = vmatpush1.xpose.msra.mxu0 0.0
        %2007 = vmatprep.subr.mxu0 0.0
        %2008 = vmatpush1.xpose.msra.mxu0 0.0
        %2009 = vmatprep.subr.mxu0 0.0
        %2010 = vmatpush1.xpose.msra.mxu0 0.0
        %2011 = vmatprep.subr.mxu0 0.0
        %2012 = vmatpush1.xpose.msra.mxu0 0.0
        %2013 = vmatprep.subr.mxu0 0.0
        %2014 = vmatpush1.xpose.msra.mxu0 0.0
        %2015 = vmatprep.subr.mxu0 0.0
        %2016 = vmatpush1.xpose.msra.mxu0 0.0
        %2017 = vmatprep.subr.mxu0 0.0
        %2018 = vmatpush1.xpose.msra.mxu0 0.0
        %2019 = vmatprep.subr.mxu0 0.0
        %2020 = vmatpush1.xpose.msra.mxu0 0.0
        %2021 = vmatprep.subr.mxu0 0.0
        %2022 = vmatpush1.xpose.msra.mxu0 0.0
        %2023 = vmatprep.subr.mxu0 0.0
        %2024 = vmatpush1.xpose.msra.mxu0 0.0
        %2025 = vmatprep.subr.mxu0 0.0
        %2026 = vmatpush1.xpose.msra.mxu0 0.0
        %2027 = vmatprep.subr.mxu0 0.0
        %2028 = vmatpush1.xpose.msra.mxu0 0.0
        %2029 = vmatprep.subr.mxu0 0.0
        %2030 = vmatpush1.xpose.msra.mxu0 0.0
        %2031 = vmatprep.subr.mxu0 0.0
        %2032 = vmatpush1.xpose.msra.mxu0 0.0
        %2033 = vmatprep.subr.mxu0 0.0
        %2034 = vmatpush1.xpose.msra.mxu0 0.0
        %2035 = vmatprep.subr.mxu0 0.0
        %2036 = vmatpush1.xpose.msra.mxu0 0.0
        %2037 = vmatprep.mubr.f32.mxu0 %v1898
        %2038 = vmatmul.mubr.f32.gmra.mrb[0].mxu0 %v1894
        %v2039 = vpop.f32.mrb[0].mxu0
        %v2040 = vadd.f32 %v1970, %v2039
        %v2041 = vpop.f32.mrb[0].mxu0
        %2042 = vdwg.mxu0
        %2043 = vmatprep.subr.mxu0 %v430
        %2044 = vmatpush1.xpose.msra.mxu0 %v429
        %2045 = vmatprep.subr.mxu0 0.0
        %2046 = vmatpush1.xpose.msra.mxu0 0.0
        %2047 = vmatprep.subr.mxu0 0.0
        %2048 = vmatpush1.xpose.msra.mxu0 0.0
        %2049 = vmatprep.subr.mxu0 0.0
        %2050 = vmatpush1.xpose.msra.mxu0 0.0
        %2051 = vmatprep.subr.mxu0 0.0
        %2052 = vmatpush1.xpose.msra.mxu0 0.0
        %2053 = vmatprep.subr.mxu0 0.0
        %2054 = vmatpush1.xpose.msra.mxu0 0.0
        %2055 = vmatprep.subr.mxu0 0.0
        %2056 = vmatpush1.xpose.msra.mxu0 0.0
        %2057 = vmatprep.subr.mxu0 0.0
        %2058 = vmatpush1.xpose.msra.mxu0 0.0
        %2059 = vmatprep.subr.mxu0 0.0
        %2060 = vmatpush1.xpose.msra.mxu0 0.0
        %2061 = vmatprep.subr.mxu0 0.0
        %2062 = vmatpush1.xpose.msra.mxu0 0.0
        %2063 = vmatprep.subr.mxu0 0.0
        %2064 = vmatpush1.xpose.msra.mxu0 0.0
        %2065 = vmatprep.subr.mxu0 0.0
        %2066 = vmatpush1.xpose.msra.mxu0 0.0
        %2067 = vmatprep.subr.mxu0 0.0
        %2068 = vmatpush1.xpose.msra.mxu0 0.0
        %2069 = vmatprep.subr.mxu0 0.0
        %2070 = vmatpush1.xpose.msra.mxu0 0.0
        %2071 = vmatprep.subr.mxu0 0.0
        %2072 = vmatpush1.xpose.msra.mxu0 0.0
        %2073 = vmatprep.subr.mxu0 0.0
        %2074 = vmatpush1.xpose.msra.mxu0 0.0
        %2075 = vmatprep.subr.mxu0 0.0
        %2076 = vmatpush1.xpose.msra.mxu0 0.0
        %2077 = vmatprep.subr.mxu0 0.0
        %2078 = vmatpush1.xpose.msra.mxu0 0.0
        %2079 = vmatprep.subr.mxu0 0.0
        %2080 = vmatpush1.xpose.msra.mxu0 0.0
        %2081 = vmatprep.subr.mxu0 0.0
        %2082 = vmatpush1.xpose.msra.mxu0 0.0
        %2083 = vmatprep.subr.mxu0 0.0
        %2084 = vmatpush1.xpose.msra.mxu0 0.0
        %2085 = vmatprep.subr.mxu0 0.0
        %2086 = vmatpush1.xpose.msra.mxu0 0.0
        %2087 = vmatprep.subr.mxu0 0.0
        %2088 = vmatpush1.xpose.msra.mxu0 0.0
        %2089 = vmatprep.subr.mxu0 0.0
        %2090 = vmatpush1.xpose.msra.mxu0 0.0
        %2091 = vmatprep.subr.mxu0 0.0
        %2092 = vmatpush1.xpose.msra.mxu0 0.0
        %2093 = vmatprep.subr.mxu0 0.0
        %2094 = vmatpush1.xpose.msra.mxu0 0.0
        %2095 = vmatprep.subr.mxu0 0.0
        %2096 = vmatpush1.xpose.msra.mxu0 0.0
        %2097 = vmatprep.subr.mxu0 0.0
        %2098 = vmatpush1.xpose.msra.mxu0 0.0
        %2099 = vmatprep.subr.mxu0 0.0
        %2100 = vmatpush1.xpose.msra.mxu0 0.0
        %2101 = vmatprep.subr.mxu0 0.0
        %2102 = vmatpush1.xpose.msra.mxu0 0.0
        %2103 = vmatprep.subr.mxu0 0.0
        %2104 = vmatpush1.xpose.msra.mxu0 0.0
        %2105 = vmatprep.subr.mxu0 0.0
        %2106 = vmatpush1.xpose.msra.mxu0 0.0
        %2107 = vmatprep.mubr.f32.mxu0 %v424
        %2108 = vmatmul.mubr.f32.gmra.mrb[0].mxu0 %v423
        %v2109 = vpop.f32.mrb[0].mxu0
        %v2110 = vadd.f32 0.0, %v2109
        %v2111 = vpop.f32.mrb[0].mxu0
        %2112 = vdwg.mxu0
        %2113 = vmatprep.subr.mxu0 %v432
        %2114 = vmatpush1.xpose.msra.mxu0 %v431
        %2115 = vmatprep.subr.mxu0 0.0
        %2116 = vmatpush1.xpose.msra.mxu0 0.0
        %2117 = vmatprep.subr.mxu0 0.0
        %2118 = vmatpush1.xpose.msra.mxu0 0.0
        %2119 = vmatprep.subr.mxu0 0.0
        %2120 = vmatpush1.xpose.msra.mxu0 0.0
        %2121 = vmatprep.subr.mxu0 0.0
        %2122 = vmatpush1.xpose.msra.mxu0 0.0
        %2123 = vmatprep.subr.mxu0 0.0
        %2124 = vmatpush1.xpose.msra.mxu0 0.0
        %2125 = vmatprep.subr.mxu0 0.0
        %2126 = vmatpush1.xpose.msra.mxu0 0.0
        %2127 = vmatprep.subr.mxu0 0.0
        %2128 = vmatpush1.xpose.msra.mxu0 0.0
        %2129 = vmatprep.subr.mxu0 0.0
        %2130 = vmatpush1.xpose.msra.mxu0 0.0
        %2131 = vmatprep.subr.mxu0 0.0
        %2132 = vmatpush1.xpose.msra.mxu0 0.0
        %2133 = vmatprep.subr.mxu0 0.0
        %2134 = vmatpush1.xpose.msra.mxu0 0.0
        %2135 = vmatprep.subr.mxu0 0.0
        %2136 = vmatpush1.xpose.msra.mxu0 0.0
        %2137 = vmatprep.subr.mxu0 0.0
        %2138 = vmatpush1.xpose.msra.mxu0 0.0
        %2139 = vmatprep.subr.mxu0 0.0
        %2140 = vmatpush1.xpose.msra.mxu0 0.0
        %2141 = vmatprep.subr.mxu0 0.0
        %2142 = vmatpush1.xpose.msra.mxu0 0.0
        %2143 = vmatprep.subr.mxu0 0.0
        %2144 = vmatpush1.xpose.msra.mxu0 0.0
        %2145 = vmatprep.subr.mxu0 0.0
        %2146 = vmatpush1.xpose.msra.mxu0 0.0
        %2147 = vmatprep.subr.mxu0 0.0
        %2148 = vmatpush1.xpose.msra.mxu0 0.0
        %2149 = vmatprep.subr.mxu0 0.0
        %2150 = vmatpush1.xpose.msra.mxu0 0.0
        %2151 = vmatprep.subr.mxu0 0.0
        %2152 = vmatpush1.xpose.msra.mxu0 0.0
        %2153 = vmatprep.subr.mxu0 0.0
        %2154 = vmatpush1.xpose.msra.mxu0 0.0
        %2155 = vmatprep.subr.mxu0 0.0
        %2156 = vmatpush1.xpose.msra.mxu0 0.0
        %2157 = vmatprep.subr.mxu0 0.0
        %2158 = vmatpush1.xpose.msra.mxu0 0.0
        %2159 = vmatprep.subr.mxu0 0.0
        %2160 = vmatpush1.xpose.msra.mxu0 0.0
        %2161 = vmatprep.subr.mxu0 0.0
        %2162 = vmatpush1.xpose.msra.mxu0 0.0
        %2163 = vmatprep.subr.mxu0 0.0
        %2164 = vmatpush1.xpose.msra.mxu0 0.0
        %2165 = vmatprep.subr.mxu0 0.0
        %2166 = vmatpush1.xpose.msra.mxu0 0.0
        %2167 = vmatprep.subr.mxu0 0.0
        %2168 = vmatpush1.xpose.msra.mxu0 0.0
        %2169 = vmatprep.subr.mxu0 0.0
        %2170 = vmatpush1.xpose.msra.mxu0 0.0
        %2171 = vmatprep.subr.mxu0 0.0
        %2172 = vmatpush1.xpose.msra.mxu0 0.0
        %2173 = vmatprep.subr.mxu0 0.0
        %2174 = vmatpush1.xpose.msra.mxu0 0.0
        %2175 = vmatprep.subr.mxu0 0.0
        %2176 = vmatpush1.xpose.msra.mxu0 0.0
        %2177 = vmatprep.mubr.f32.mxu0 %v426
        %2178 = vmatmul.mubr.f32.gmra.mrb[0].mxu0 %v425
        %v2179 = vpop.f32.mrb[0].mxu0
        %v2180 = vadd.f32 %v2110, %v2179
        %v2181 = vpop.f32.mrb[0].mxu0
        %2182 = vdwg.mxu0
        %2183 = vmatprep.subr.mxu0 %v434
        %2184 = vmatpush1.xpose.msra.mxu0 %v433
        %2185 = vmatprep.subr.mxu0 0.0
        %2186 = vmatpush1.xpose.msra.mxu0 0.0
        %2187 = vmatprep.subr.mxu0 0.0
        %2188 = vmatpush1.xpose.msra.mxu0 0.0
        %2189 = vmatprep.subr.mxu0 0.0
        %2190 = vmatpush1.xpose.msra.mxu0 0.0
        %2191 = vmatprep.subr.mxu0 0.0
        %2192 = vmatpush1.xpose.msra.mxu0 0.0
        %2193 = vmatprep.subr.mxu0 0.0
        %2194 = vmatpush1.xpose.msra.mxu0 0.0
        %2195 = vmatprep.subr.mxu0 0.0
        %2196 = vmatpush1.xpose.msra.mxu0 0.0
        %2197 = vmatprep.subr.mxu0 0.0
        %2198 = vmatpush1.xpose.msra.mxu0 0.0
        %2199 = vmatprep.subr.mxu0 0.0
        %2200 = vmatpush1.xpose.msra.mxu0 0.0
        %2201 = vmatprep.subr.mxu0 0.0
        %2202 = vmatpush1.xpose.msra.mxu0 0.0
        %2203 = vmatprep.subr.mxu0 0.0
        %2204 = vmatpush1.xpose.msra.mxu0 0.0
        %2205 = vmatprep.subr.mxu0 0.0
        %2206 = vmatpush1.xpose.msra.mxu0 0.0
        %2207 = vmatprep.subr.mxu0 0.0
        %2208 = vmatpush1.xpose.msra.mxu0 0.0
        %2209 = vmatprep.subr.mxu0 0.0
        %2210 = vmatpush1.xpose.msra.mxu0 0.0
        %2211 = vmatprep.subr.mxu0 0.0
        %2212 = vmatpush1.xpose.msra.mxu0 0.0
        %2213 = vmatprep.subr.mxu0 0.0
        %2214 = vmatpush1.xpose.msra.mxu0 0.0
        %2215 = vmatprep.subr.mxu0 0.0
        %2216 = vmatpush1.xpose.msra.mxu0 0.0
        %2217 = vmatprep.subr.mxu0 0.0
        %2218 = vmatpush1.xpose.msra.mxu0 0.0
        %2219 = vmatprep.subr.mxu0 0.0
        %2220 = vmatpush1.xpose.msra.mxu0 0.0
        %2221 = vmatprep.subr.mxu0 0.0
        %2222 = vmatpush1.xpose.msra.mxu0 0.0
        %2223 = vmatprep.subr.mxu0 0.0
        %2224 = vmatpush1.xpose.msra.mxu0 0.0
        %2225 = vmatprep.subr.mxu0 0.0
        %2226 = vmatpush1.xpose.msra.mxu0 0.0
        %2227 = vmatprep.subr.mxu0 0.0
        %2228 = vmatpush1.xpose.msra.mxu0 0.0
        %2229 = vmatprep.subr.mxu0 0.0
        %2230 = vmatpush1.xpose.msra.mxu0 0.0
        %2231 = vmatprep.subr.mxu0 0.0
        %2232 = vmatpush1.xpose.msra.mxu0 0.0
        %2233 = vmatprep.subr.mxu0 0.0
        %2234 = vmatpush1.xpose.msra.mxu0 0.0
        %2235 = vmatprep.subr.mxu0 0.0
        %2236 = vmatpush1.xpose.msra.mxu0 0.0
        %2237 = vmatprep.subr.mxu0 0.0
        %2238 = vmatpush1.xpose.msra.mxu0 0.0
        %2239 = vmatprep.subr.mxu0 0.0
        %2240 = vmatpush1.xpose.msra.mxu0 0.0
        %2241 = vmatprep.subr.mxu0 0.0
        %2242 = vmatpush1.xpose.msra.mxu0 0.0
        %2243 = vmatprep.subr.mxu0 0.0
        %2244 = vmatpush1.xpose.msra.mxu0 0.0
        %2245 = vmatprep.subr.mxu0 0.0
        %2246 = vmatpush1.xpose.msra.mxu0 0.0
        %2247 = vmatprep.mubr.f32.mxu0 %v428
        %2248 = vmatmul.mubr.f32.gmra.mrb[0].mxu0 %v427
        %v2249 = vpop.f32.mrb[0].mxu0
        %v2250 = vadd.f32 %v2180, %v2249
        %v2251 = vpop.f32.mrb[0].mxu0
        %2252 = vdwg.mxu0
        %v2253 = vmul.f32 %v2250, 0.35355338
        %vm2254 = vcmask 64512
        %v2255 = vsel %vm2254, %v2253, -inf
        %v2256 = vrot.slane %v2255, 4
        %v2257 = vmax.f32 %v2255, %v2256
        %v2258 = vrot.slane %v2257, 2
        %v2259 = vmax.f32 %v2257, %v2258
        %v2260 = vrot.slane %v2259, 1
        %v2261 = vmax.f32 %v2259, %v2260
        %v2262 = vsub.f32 %v2253, %v2261
        %v2263 = vmul.f32 %v2262, 1.442695
        %v2264 = vpow.pop %v2263
        %v2265 = vsel %vm2254, %v2264, 0.0
        %v2266 = vrot.slane %v2265, 4
        %v2267 = vadd.f32 %v2265, %v2266
        %v2268 = vrot.slane %v2267, 2
        %v2269 = vadd.f32 %v2267, %v2268
        %v2270 = vrot.slane %v2269, 1
        %v2271 = vadd.f32 %v2269, %v2270
        %v2272 = vrcp.pop %v2271
        %v2273 = vmul.f32 %v2264, %v2272
        %v2274 = vsub.f32 1.0, %v2040
        %v2275 = vlaneseq
        %v2276 = vshrl.u32 %v2275, 7
        %v2277 = vsub.s32 0, %v2276
        %v2278 = vrot.slane %v2274, %v2277
        %v2279 = vmul.f32 %v2273, %v2278
        %v2280 = vmul.f32 %v2040, 0.125
        %v2281 = vlaneseq
        %v2282 = vshrl.u32 %v2281, 7
        %v2283 = vsub.s32 0, %v2282
        %v2284 = vrot.slane %v2280, %v2283
        %v2285 = vadd.f32 %v2279, %v2284
        %v2286 = vmul.f32 %v2285, 0.03608439
        %v2287 = vsel %vm2254, %v2286, -inf
        %2288 = vmax.xlane.f32.xlu0 %v2287
        %v2289 = vpop.xlane.xlu0 %2288
        %v2290 = vsub.f32 %v2286, %v2289
        %v2291 = vmul.f32 %v2290, 1.442695
        %v2292 = vpow.pop %v2291
        %v2293 = vsel %vm2254, %v2292, 0.0
        %2294 = vadd.xlane.f32.xlu0 %v2293
        %v2295 = vpop.xlane.xlu0 %2294
        %v2296 = vrcp.pop %v2295
        %v2297 = vmul.f32 %v2292, %v2296
        %v2299 = vsel %vm2254, %v2297, 0
        %2301 = vmatprep.subr.mxu0 %v436
        %2302 = vmatpush1.msra.mxu0 %v435
        %2303 = vmatprep.subr.mxu0 0.0
        %2304 = vmatpush1.msra.mxu0 0.0
        %2305 = vmatprep.subr.mxu0 0.0
        %2306 = vmatpush1.msra.mxu0 0.0
        %2307 = vmatprep.subr.mxu0 0.0
        %2308 = vmatpush1.msra.mxu0 0.0
        %2309 = vmatprep.subr.mxu0 0.0
        %2310 = vmatpush1.msra.mxu0 0.0
        %2311 = vmatprep.subr.mxu0 0.0
        %2312 = vmatpush1.msra.mxu0 0.0
        %2313 = vmatprep.subr.mxu0 0.0
        %2314 = vmatpush1.msra.mxu0 0.0
        %2315 = vmatprep.subr.mxu0 0.0
        %2316 = vmatpush1.msra.mxu0 0.0
        %2317 = vmatprep.subr.mxu0 0.0
        %2318 = vmatpush1.msra.mxu0 0.0
        %2319 = vmatprep.subr.mxu0 0.0
        %2320 = vmatpush1.msra.mxu0 0.0
        %2321 = vmatprep.subr.mxu0 0.0
        %2322 = vmatpush1.msra.mxu0 0.0
        %2323 = vmatprep.subr.mxu0 0.0
        %2324 = vmatpush1.msra.mxu0 0.0
        %2325 = vmatprep.subr.mxu0 0.0
        %2326 = vmatpush1.msra.mxu0 0.0
        %2327 = vmatprep.subr.mxu0 0.0
        %2328 = vmatpush1.msra.mxu0 0.0
        %2329 = vmatprep.subr.mxu0 0.0
        %2330 = vmatpush1.msra.mxu0 0.0
        %2331 = vmatprep.subr.mxu0 0.0
        %2332 = vmatpush1.msra.mxu0 0.0
        %2333 = vmatprep.subr.mxu0 0.0
        %2334 = vmatpush1.msra.mxu0 0.0
        %2335 = vmatprep.subr.mxu0 0.0
        %2336 = vmatpush1.msra.mxu0 0.0
        %2337 = vmatprep.subr.mxu0 0.0
        %2338 = vmatpush1.msra.mxu0 0.0
        %2339 = vmatprep.subr.mxu0 0.0
        %2340 = vmatpush1.msra.mxu0 0.0
        %2341 = vmatprep.subr.mxu0 0.0
        %2342 = vmatpush1.msra.mxu0 0.0
        %2343 = vmatprep.subr.mxu0 0.0
        %2344 = vmatpush1.msra.mxu0 0.0
        %2345 = vmatprep.subr.mxu0 0.0
        %2346 = vmatpush1.msra.mxu0 0.0
        %2347 = vmatprep.subr.mxu0 0.0
        %2348 = vmatpush1.msra.mxu0 0.0
        %2349 = vmatprep.subr.mxu0 0.0
        %2350 = vmatpush1.msra.mxu0 0.0
        %2351 = vmatprep.subr.mxu0 0.0
        %2352 = vmatpush1.msra.mxu0 0.0
        %2353 = vmatprep.subr.mxu0 0.0
        %2354 = vmatpush1.msra.mxu0 0.0
        %2355 = vmatprep.subr.mxu0 0.0
        %2356 = vmatpush1.msra.mxu0 0.0
        %2357 = vmatprep.subr.mxu0 0.0
        %2358 = vmatpush1.msra.mxu0 0.0
        %2359 = vmatprep.subr.mxu0 0.0
        %2360 = vmatpush1.msra.mxu0 0.0
        %2361 = vmatprep.subr.mxu0 0.0
        %2362 = vmatpush1.msra.mxu0 0.0
        %2363 = vmatprep.subr.mxu0 0.0
        %2364 = vmatpush1.msra.mxu0 0.0
        %2365 = vmatprep.mubr.f32.mxu0 0.0
        %2366 = vmatmul.mubr.f32.gmra.mrb[0].mxu0 %v2299
        %v2367 = vpop.f32.mrb[0].mxu0
        %v2368 = vadd.f32 %v423, %v2367
        %v2369 = vpop.f32.mrb[0].mxu0
        %v2370 = vadd.f32 %v424, %v2369
        %2371 = vdwg.mxu0
        %2372 = vmatprep.subr.mxu0 %v438
        %2373 = vmatpush1.msra.mxu0 %v437
        %2374 = vmatprep.subr.mxu0 0.0
        %2375 = vmatpush1.msra.mxu0 0.0
        %2376 = vmatprep.subr.mxu0 0.0
        %2377 = vmatpush1.msra.mxu0 0.0
        %2378 = vmatprep.subr.mxu0 0.0
        %2379 = vmatpush1.msra.mxu0 0.0
        %2380 = vmatprep.subr.mxu0 0.0
        %2381 = vmatpush1.msra.mxu0 0.0
        %2382 = vmatprep.subr.mxu0 0.0
        %2383 = vmatpush1.msra.mxu0 0.0
        %2384 = vmatprep.subr.mxu0 0.0
        %2385 = vmatpush1.msra.mxu0 0.0
        %2386 = vmatprep.subr.mxu0 0.0
        %2387 = vmatpush1.msra.mxu0 0.0
        %2388 = vmatprep.subr.mxu0 0.0
        %2389 = vmatpush1.msra.mxu0 0.0
        %2390 = vmatprep.subr.mxu0 0.0
        %2391 = vmatpush1.msra.mxu0 0.0
        %2392 = vmatprep.subr.mxu0 0.0
        %2393 = vmatpush1.msra.mxu0 0.0
        %2394 = vmatprep.subr.mxu0 0.0
        %2395 = vmatpush1.msra.mxu0 0.0
        %2396 = vmatprep.subr.mxu0 0.0
        %2397 = vmatpush1.msra.mxu0 0.0
        %2398 = vmatprep.subr.mxu0 0.0
        %2399 = vmatpush1.msra.mxu0 0.0
        %2400 = vmatprep.subr.mxu0 0.0
        %2401 = vmatpush1.msra.mxu0 0.0
        %2402 = vmatprep.subr.mxu0 0.0
        %2403 = vmatpush1.msra.mxu0 0.0
        %2404 = vmatprep.subr.mxu0 0.0
        %2405 = vmatpush1.msra.mxu0 0.0
        %2406 = vmatprep.subr.mxu0 0.0
        %2407 = vmatpush1.msra.mxu0 0.0
        %2408 = vmatprep.subr.mxu0 0.0
        %2409 = vmatpush1.msra.mxu0 0.0
        %2410 = vmatprep.subr.mxu0 0.0
        %2411 = vmatpush1.msra.mxu0 0.0
        %2412 = vmatprep.subr.mxu0 0.0
        %2413 = vmatpush1.msra.mxu0 0.0
        %2414 = vmatprep.subr.mxu0 0.0
        %2415 = vmatpush1.msra.mxu0 0.0
        %2416 = vmatprep.subr.mxu0 0.0
        %2417 = vmatpush1.msra.mxu0 0.0
        %2418 = vmatprep.subr.mxu0 0.0
        %2419 = vmatpush1.msra.mxu0 0.0
        %2420 = vmatprep.subr.mxu0 0.0
        %2421 = vmatpush1.msra.mxu0 0.0
        %2422 = vmatprep.subr.mxu0 0.0
        %2423 = vmatpush1.msra.mxu0 0.0
        %2424 = vmatprep.subr.mxu0 0.0
        %2425 = vmatpush1.msra.mxu0 0.0
        %2426 = vmatprep.subr.mxu0 0.0
        %2427 = vmatpush1.msra.mxu0 0.0
        %2428 = vmatprep.subr.mxu0 0.0
        %2429 = vmatpush1.msra.mxu0 0.0
        %2430 = vmatprep.subr.mxu0 0.0
        %2431 = vmatpush1.msra.mxu0 0.0
        %2432 = vmatprep.subr.mxu0 0.0
        %2433 = vmatpush1.msra.mxu0 0.0
        %2434 = vmatprep.subr.mxu0 0.0
        %2435 = vmatpush1.msra.mxu0 0.0
        %2436 = vmatprep.mubr.f32.mxu0 0.0
        %2437 = vmatmul.mubr.f32.gmra.mrb[0].mxu0 %v2299
        %v2438 = vpop.f32.mrb[0].mxu0
        %v2439 = vadd.f32 %v425, %v2438
        %v2440 = vpop.f32.mrb[0].mxu0
        %v2441 = vadd.f32 %v426, %v2440
        %2442 = vdwg.mxu0
        %2443 = vmatprep.subr.mxu0 %v440
        %2444 = vmatpush1.msra.mxu0 %v439
        %2445 = vmatprep.subr.mxu0 0.0
        %2446 = vmatpush1.msra.mxu0 0.0
        %2447 = vmatprep.subr.mxu0 0.0
        %2448 = vmatpush1.msra.mxu0 0.0
        %2449 = vmatprep.subr.mxu0 0.0
        %2450 = vmatpush1.msra.mxu0 0.0
        %2451 = vmatprep.subr.mxu0 0.0
        %2452 = vmatpush1.msra.mxu0 0.0
        %2453 = vmatprep.subr.mxu0 0.0
        %2454 = vmatpush1.msra.mxu0 0.0
        %2455 = vmatprep.subr.mxu0 0.0
        %2456 = vmatpush1.msra.mxu0 0.0
        %2457 = vmatprep.subr.mxu0 0.0
        %2458 = vmatpush1.msra.mxu0 0.0
        %2459 = vmatprep.subr.mxu0 0.0
        %2460 = vmatpush1.msra.mxu0 0.0
        %2461 = vmatprep.subr.mxu0 0.0
        %2462 = vmatpush1.msra.mxu0 0.0
        %2463 = vmatprep.subr.mxu0 0.0
        %2464 = vmatpush1.msra.mxu0 0.0
        %2465 = vmatprep.subr.mxu0 0.0
        %2466 = vmatpush1.msra.mxu0 0.0
        %2467 = vmatprep.subr.mxu0 0.0
        %2468 = vmatpush1.msra.mxu0 0.0
        %2469 = vmatprep.subr.mxu0 0.0
        %2470 = vmatpush1.msra.mxu0 0.0
        %2471 = vmatprep.subr.mxu0 0.0
        %2472 = vmatpush1.msra.mxu0 0.0
        %2473 = vmatprep.subr.mxu0 0.0
        %2474 = vmatpush1.msra.mxu0 0.0
        %2475 = vmatprep.subr.mxu0 0.0
        %2476 = vmatpush1.msra.mxu0 0.0
        %2477 = vmatprep.subr.mxu0 0.0
        %2478 = vmatpush1.msra.mxu0 0.0
        %2479 = vmatprep.subr.mxu0 0.0
        %2480 = vmatpush1.msra.mxu0 0.0
        %2481 = vmatprep.subr.mxu0 0.0
        %2482 = vmatpush1.msra.mxu0 0.0
        %2483 = vmatprep.subr.mxu0 0.0
        %2484 = vmatpush1.msra.mxu0 0.0
        %2485 = vmatprep.subr.mxu0 0.0
        %2486 = vmatpush1.msra.mxu0 0.0
        %2487 = vmatprep.subr.mxu0 0.0
        %2488 = vmatpush1.msra.mxu0 0.0
        %2489 = vmatprep.subr.mxu0 0.0
        %2490 = vmatpush1.msra.mxu0 0.0
        %2491 = vmatprep.subr.mxu0 0.0
        %2492 = vmatpush1.msra.mxu0 0.0
        %2493 = vmatprep.subr.mxu0 0.0
        %2494 = vmatpush1.msra.mxu0 0.0
        %2495 = vmatprep.subr.mxu0 0.0
        %2496 = vmatpush1.msra.mxu0 0.0
        %2497 = vmatprep.subr.mxu0 0.0
        %2498 = vmatpush1.msra.mxu0 0.0
        %2499 = vmatprep.subr.mxu0 0.0
        %2500 = vmatpush1.msra.mxu0 0.0
        %2501 = vmatprep.subr.mxu0 0.0
        %2502 = vmatpush1.msra.mxu0 0.0
        %2503 = vmatprep.subr.mxu0 0.0
        %2504 = vmatpush1.msra.mxu0 0.0
        %2505 = vmatprep.subr.mxu0 0.0
        %2506 = vmatpush1.msra.mxu0 0.0
        %2507 = vmatprep.mubr.f32.mxu0 0.0
        %2508 = vmatmul.mubr.f32.gmra.mrb[0].mxu0 %v2299
        %v2509 = vpop.f32.mrb[0].mxu0
        %v2510 = vadd.f32 %v427, %v2509
        %v2511 = vpop.f32.mrb[0].mxu0
        %v2512 = vadd.f32 %v428, %v2511
        %2513 = vdwg.mxu0
        %2514 = vst [vmem:[%s415] sm:$0xff] %v2368
        %2515 = vst [vmem:[%s415 + $0x8] sm:$0xff] %v2370
        %2516 = vst [vmem:[%s415 + $0x10] sm:$0xff] %v2439
        %2517 = vst [vmem:[%s415 + $0x18] sm:$0xff] %v2441
        %2518 = vst [vmem:[%s415 + $0x20] sm:$0xff] %v2510
        %2519 = vst [vmem:[%s415 + $0x28] sm:$0xff] %v2512
        %2520 = vst.msk [vmem:[%s422] sm:$0xff] %vm2254, %v2297
        %s2521 = sand.u32 %s205, 1
        %s2522 = scalar_lea.sflag [#allocation5], %s2521
        %s2523 = sand.u32 %s205, 1
        %s2524 = smul.addr %s2523, 48
        %s2525 = scalar_lea.vmem [#allocation11], %s2524
        %s2526 = sand.u32 %s231, 1
        %s2527 = scalar_lea.sflag [#allocation13], %s2526
        %s2528 = sand.u32 %s231, 1
        %s2529 = smul.addr %s2528, 8
        %s2530 = scalar_lea.vmem [#allocation12], %s2529
        // Predicated region
        $region65: #{tpu_custom_call.1} parent=47 // pred_check
          %p2531 = pneg %p215
        $region66: #{tpu_custom_call.1} parent=47 // pred_check_branch
          %2533 = sbr.rel (%p2531) target = $region68
        $region67: #{tpu_custom_call.1} parent=47 // pred_region
          %s2535 = ssub.s32 768, 768
          %2536 = vsyncadd %s2522, %s2535
          %s2537 = smul.addr %s35, 6
          %s2538 = smul.addr %s2537, 128
          %s2539 = scalar_lea.hbm %s7, %s2538
          %s2541 = sshll.u32 %s2525, 4
          %s2542 = int_to_ptr.vmem [resolvable:$true] %s2541
          %2544 = dma.vmem_to_hbm [thread:$0]  %s2542, 768, %s2539, %s2522
        $region68: #{tpu_custom_call.1} parent=47 // pred_fallthru
          _
        // Predicated region
        $region69: #{tpu_custom_call.1} parent=47 // pred_check
          %p2545 = pneg %p241
        $region70: #{tpu_custom_call.1} parent=47 // pred_check_branch
          %2547 = sbr.rel (%p2545) target = $region72
        $region71: #{tpu_custom_call.1} parent=47 // pred_region
          %s2549 = ssub.s32 128, 128
          %2550 = vsyncadd %s2527, %s2549
          %s2551 = smul.addr %s35, 128
          %s2552 = scalar_lea.hbm %s8, %s2551
          %s2554 = sshll.u32 %s2530, 4
          %s2555 = int_to_ptr.vmem [resolvable:$true] %s2554
          %2557 = dma.vmem_to_hbm [thread:$0]  %s2555, 128, %s2552, %s2527
        $region72: #{tpu_custom_call.1} parent=47 // pred_fallthru
          _
      $region48: #{tpu_custom_call.1} parent=5 // pred_fallthru
        _
      %p2558 = scmp.le.s32.totalorder 2, %s30
      // Predicated region
      $region73: #{tpu_custom_call.1} parent=5 // pred_check
        %p2559 = pneg %p2558
      $region74: #{tpu_custom_call.1} parent=5 // pred_check_branch
        %2561 = sbr.rel (%p2559) target = $region76
      $region75: #{tpu_custom_call.1} parent=5 // pred_region
        %s2562 = ssub.s32 %s30, 2
        // Predicated region
        $region77: #{tpu_custom_call.1} parent=75 // pred_check
          %p2563 = pneg %p221
        $region78: #{tpu_custom_call.1} parent=75 // pred_check_branch
          %2565 = sbr.rel (%p2563) target = $region80
        $region79: #{tpu_custom_call.1} parent=75 // pred_region
          %s2566 = sand.u32 %s206, 1
          %s2567 = scalar_lea.sflag [#allocation5], %s2566
          %s2568 = sand.u32 %s206, 1
          %s2569 = smul.addr %s2568, 48
          %s2570 = scalar_lea.vmem [#allocation11], %s2569
          %2571 = dma.done %s2567, 768
        $region80: #{tpu_custom_call.1} parent=75 // pred_fallthru
          _
        // Predicated region
        $region81: #{tpu_custom_call.1} parent=75 // pred_check
          %p2572 = pneg %p247
        $region82: #{tpu_custom_call.1} parent=75 // pred_check_branch
          %2574 = sbr.rel (%p2572) target = $region84
        $region83: #{tpu_custom_call.1} parent=75 // pred_region
          %s2575 = sand.u32 %s232, 1
          %s2576 = scalar_lea.sflag [#allocation13], %s2575
          %s2577 = sand.u32 %s232, 1
          %s2578 = smul.addr %s2577, 8
          %s2579 = scalar_lea.vmem [#allocation12], %s2578
          %2580 = dma.done %s2576, 128
        $region84: #{tpu_custom_call.1} parent=75 // pred_fallthru
          _
      $region76: #{tpu_custom_call.1} parent=5 // pred_fallthru
        _
    $region6: #{tpu_custom_call.1} parent=1 // loop_footer
      %s34 = sadd.s32 1, %s30
    $region7: #{tpu_custom_call.1} parent=1 // loop_footer_branch
      %29 = sbr.rel target = $region3
    $region8: #{tpu_custom_call.1} parent=1 // loop_exit
      _
    %2581 = vsyncpa [#allocation4], 1
    %s2582 = scalar_lea.sflag [#allocation4], 1
    %2583 = vsyncpa %s2582, 1
    %2584 = vsyncpa [#allocation7], 1
    %s2585 = scalar_lea.sflag [#allocation7], 1
    %2586 = vsyncpa %s2585, 1
    %2587 = vsyncpa [#allocation10], 1
    %2588 = vsyncpa [#allocation5], 1
    %s2589 = scalar_lea.sflag [#allocation5], 1
    %2590 = vsyncpa %s2589, 1
    %2591 = vsyncpa [#allocation13], 1
    %s2592 = scalar_lea.sflag [#allocation13], 1
    %2593 = vsyncpa %s2592, 1

</llo_original>
